<compile_context>
chip_gen: v7x
topology: tpu7x:2x2x1
jax: 0.10.0
libtpu: 0.0.40
codegen_flags: <defaults>
</compile_context>

<pallas_src>
import jax
import jax.numpy as jnp
from jax.experimental import pallas as pl
from jax.experimental.pallas import tpu as pltpu


def _round_up(x, m):
    return (x + m - 1) // m * m


def _vmem_capacity_bytes():
    try:
        return int(pltpu.get_tpu_info().vmem_capacity_bytes)
    except Exception:
        return 64 * 1024 * 1024  # conservative default (v7x per-TensorCore VMEM)


def _vmem_bytes(ho_t, C, Cf, W, df, couts, itemsize):
    """Rough per-grid-step VMEM footprint, with (8,128) vreg-tile padding."""
    hin_t = ho_t * df
    Wo = W // df
    # double-buffered input / output blocks
    b = 2 * C * _round_up(hin_t, 8) * _round_up(W, 128) * itemsize
    b += 2 * Cf * _round_up(ho_t, 8) * _round_up(Wo, 128) * itemsize
    # live per-stage activation values (f32); stage outputs are transposed
    rows, cols, cin = hin_t, W, C
    for cout in couts:
        b += cin * _round_up(rows, 8) * _round_up(cols, 128) * 4
        b += cout * _round_up(cols // 2, 8) * _round_up(rows // 2, 128) * 4
        rows, cols, cin = cols // 2, rows // 2, cout
    return b


def _pick_row_tile(N, Ho, C, Cf, W, df, couts, itemsize, budget):
    """Output rows per grid tile: largest legal divisor of Ho fitting the budget,
    shrunk (if possible) so N * n_tiles >= 4 (>= 2 steps per v7x TensorCore)."""
    divisors = [d for d in range(Ho, 0, -1)
                if Ho % d == 0 and (d == Ho or d % 8 == 0)]
    fitting = [d for d in divisors
               if _vmem_bytes(d, C, Cf, W, df, couts, itemsize) <= budget]
    if not fitting:
        # TODO(synk): W-direction tiling for images whose smallest legal row
        # tile still exceeds the VMEM budget.
        return divisors[-1]
    ho_t = fitting[0]
    if N * (Ho // ho_t) < 4:
        for d in fitting:
            if N * (Ho // d) >= 4:
                ho_t = d
                break
    return ho_t


def _make_down_kernel(n_stages):
    """Kernel args: x_ref, [w, scale, bias] * n_stages (SMEM), o_ref."""

    def _pool_sublane_dim(y):
        # 2x max-downsample of the leading (sublane) dim of a 2-D tile.
        r, c = y.shape
        z = y.reshape(r // 2, 2, c)          # sublane-splitting reshape (minor dim intact)
        return jnp.maximum(z[:, 0], z[:, 1])

    def kernel(x_ref, *refs):
        o_ref = refs[3 * n_stages]
        cin0 = x_ref.shape[0]
        # per-channel 2-D spatial tiles: rows on sublanes, cols on lanes
        cur = [x_ref[ci].astype(jnp.float32) for ci in range(cin0)]
        for s in range(n_stages):
            w_ref = refs[3 * s]       # (cin, cout)  SMEM
            sc_ref = refs[3 * s + 1]  # (cout,)      SMEM
            b_ref = refs[3 * s + 2]   # (cout,)      SMEM
            cin, cout = w_ref.shape
            nxt = []
            for co in range(cout):
                # 1x1 conv as Cin scalar-broadcast VPU FMAs (weights from SMEM)
                acc = cur[0] * w_ref[0, co]
                for ci in range(1, cin):
                    acc = acc + cur[ci] * w_ref[ci, co]
                # folded conv-bias + BatchNorm(eval, running stats) + ReLU
                y = jnp.maximum(acc * sc_ref[co] + b_ref[co], 0.0)
                # 2x2 stride-2 max-pool: pool sublane dim, transpose the small
                # half-pooled tile, pool the other spatial dim.  The stage
                # output orientation flips; pointwise stage-2 math is agnostic
                # and the flip is undone below (or by the next stage).
                y = _pool_sublane_dim(y)
                y = y.T
                y = _pool_sublane_dim(y)
                nxt.append(y)
            cur = nxt
        for co in range(len(cur)):
            t = cur[co]
            if n_stages % 2 == 1:
                t = t.T               # odd number of stages -> restore (h, w) order
            o_ref[co, :, :] = t.astype(o_ref.dtype)

    return kernel


def init_down_params(key, in_channels, down_factor=2, eps=1e-5):
    """Deterministic synthetic params matching the PyTorch module's shapes."""
    assert down_factor in (2, 4)
    # TODO(synk): training-mode (batch-statistics) BatchNorm not implemented;
    # eval-mode running-stats BN is folded into a per-channel scale/bias.
    params = []
    c_in = in_channels
    n_stages = 1 if down_factor == 2 else 2
    for _ in range(n_stages):
        c_out = c_in * 2
        key, k1, k2, k3, k4, k5, k6 = jax.random.split(key, 7)
        w = jax.random.normal(k1, (c_out, c_in, 1, 1), jnp.float32) * 0.1   # Conv2d weight
        b = jax.random.normal(k2, (c_out,), jnp.float32) * 0.1              # Conv2d bias
        gamma = 1.0 + 0.1 * jax.random.normal(k3, (c_out,), jnp.float32)    # BN weight
        beta = 0.1 * jax.random.normal(k4, (c_out,), jnp.float32)           # BN bias
        running_mean = 0.1 * jax.random.normal(k5, (c_out,), jnp.float32)
        running_var = jnp.abs(1.0 + 0.1 * jax.random.normal(k6, (c_out,), jnp.float32))
        scale = gamma / jnp.sqrt(running_var + eps)
        bias = beta + scale * (b - running_mean)
        w_mat = jnp.transpose(w[:, :, 0, 0], (1, 0))                        # (c_in, c_out)
        params.append((w_mat, scale, bias))
        c_in = c_out
    return params


def down_forward(x_nchw, params):
    """Fused Down forward.  x: (N, C, H, W); params from init_down_params."""
    N, C, H, W = x_nchw.shape
    n_stages = len(params)
    df = 2 ** n_stages
    # TODO(synk): odd H/W (PyTorch MaxPool2d floor truncation) is not handled.
    assert H % df == 0 and W % df == 0
    Ho, Wo = H // df, W // df
    couts = [w.shape[1] for (w, _, _) in params]
    Cf = couts[-1]
    itemsize = x_nchw.dtype.itemsize

    cap = _vmem_capacity_bytes()
    budget = min(cap // 3, 40 * 1024 * 1024)
    ho_t = _pick_row_tile(N, Ho, C, Cf, W, df, couts, itemsize, budget)
    n_tiles = Ho // ho_t
    hin_t = ho_t * df
    est = _vmem_bytes(ho_t, C, Cf, W, df, couts, itemsize)
    vmem_limit = min(cap // 2, 96 * 1024 * 1024)
    if est > vmem_limit:
        vmem_limit = min(est + (8 << 20), cap * 7 // 8)

    kernel = _make_down_kernel(n_stages)

    in_specs = [pl.BlockSpec((None, C, hin_t, W), lambda n, t: (n, 0, t, 0))]
    args = [x_nchw]
    for (w_mat, scale, bias) in params:
        # tiny per-stage weights / folded BN params live in SMEM (scalar reads)
        in_specs.append(pl.BlockSpec(memory_space=pltpu.MemorySpace.SMEM))
        in_specs.append(pl.BlockSpec(memory_space=pltpu.MemorySpace.SMEM))
        in_specs.append(pl.BlockSpec(memory_space=pltpu.MemorySpace.SMEM))
        args += [w_mat, scale, bias]

    out = pl.pallas_call(
        kernel,
        out_shape=jax.ShapeDtypeStruct((N, Cf, Ho, Wo), x_nchw.dtype),
        grid_spec=pltpu.PrefetchScalarGridSpec(
            num_scalar_prefetch=0,
            grid=(N, n_tiles),
            in_specs=in_specs,
            out_specs=pl.BlockSpec((None, Cf, ho_t, Wo), lambda n, t: (n, 0, t, 0)),
            scratch_shapes=[]),
        compiler_params=pltpu.CompilerParams(
            dimension_semantics=("parallel", "parallel"),
            vmem_limit_bytes=int(vmem_limit)),
    )(*args)
    return out


def down_reference(x_nchw, params):
    """Pure-JAX NCHW reference for correctness checking."""
    x = x_nchw
    for (w_mat, scale, bias) in params:
        y = jnp.einsum('nchw,cd->ndhw', x, w_mat)
        y = y * scale[None, :, None, None] + bias[None, :, None, None]
        y = jnp.maximum(y, 0.0)
        n, c2, h, w = y.shape
        y = y.reshape(n, c2, h // 2, 2, w // 2, 2).max(axis=(3, 5))
        x = y
    return x


if __name__ == "__main__":
    key = jax.random.PRNGKey(0)
    kx16, kx32, kp2, kp4 = jax.random.split(key, 4)

    # down_factor = 2 on the module's nominal small shape: NCHW (2, 4, 16, 16)
    x16 = jax.random.normal(kx16, (2, 4, 16, 16), jnp.float32)
    params2 = init_down_params(kp2, in_channels=4, down_factor=2)
    out2 = jax.block_until_ready(down_forward(x16, params2))
    ref2 = down_reference(x16, params2)
    assert out2.shape == (2, 8, 8, 8), out2.shape
    assert jnp.allclose(out2, ref2, atol=1e-4, rtol=1e-4)

    # down_factor = 4 (two stages fused in a single pallas_call)
    x32 = jax.random.normal(kx32, (2, 4, 32, 32), jnp.float32)
    params4 = init_down_params(kp4, in_channels=4, down_factor=4)
    out4 = jax.block_until_ready(down_forward(x32, params4))
    ref4 = down_reference(x32, params4)
    assert out4.shape == (2, 16, 8, 8), out4.shape
    assert jnp.allclose(out4, ref4, atol=1e-4, rtol=1e-4)

    # down_factor = 2 on the larger spatial size (exercises the row-tiled grid)
    out2b = jax.block_until_ready(down_forward(x32, params2))
    ref2b = down_reference(x32, params2)
    assert out2b.shape == (2, 8, 16, 16), out2b.shape
    assert jnp.allclose(out2b, ref2b, atol=1e-4, rtol=1e-4)

    print("KERNEL_OK")
</pallas_src>

<mosaic_0001>
module attributes {stable_mosaic.version = 11 : i64} {
  func.func @kernel(%arg0: i32, %arg1: i32, %arg2: memref<1x4x16x16xf32, #tpu.memory_space<vmem>>, %arg3: memref<4x8xf32, #tpu.memory_space<smem>>, %arg4: memref<8xf32, #tpu.memory_space<smem>>, %arg5: memref<8xf32, #tpu.memory_space<smem>>, %arg6: memref<1x8x8x8xf32, #tpu.memory_space<vmem>>) attributes {dimension_semantics = [#tpu.dimension_semantics<parallel>, #tpu.dimension_semantics<parallel>], iteration_bounds = array<i64: 2, 1>, scalar_prefetch = 0 : i64, scratch_operands = 0 : i64, tpu.core_type = #tpu.core_type<tc>, window_params = [{transform_indices = @transform_0, window_bounds = array<i64: 1, 4, 16, 16>}, {transform_indices = @transform_1, window_bounds = array<i64: 4, 8>}, {transform_indices = @transform_2, window_bounds = array<i64: 8>}, {transform_indices = @transform_3, window_bounds = array<i64: 8>}, {transform_indices = @transform_4, window_bounds = array<i64: 1, 8, 8, 8>}]} {
    %c0 = arith.constant 0 : index
    %c0_0 = arith.constant 0 : index
    %c0_1 = arith.constant 0 : index
    %c0_2 = arith.constant 0 : index
    %0 = vector.load %arg2[%c0, %c0_0, %c0_1, %c0_2] : memref<1x4x16x16xf32, #tpu.memory_space<vmem>>, vector<1x1x16x16xf32>
    %1 = vector.shape_cast %0 : vector<1x1x16x16xf32> to vector<16x16xf32>
    %c0_3 = arith.constant 0 : index
    %c1 = arith.constant 1 : index
    %c0_4 = arith.constant 0 : index
    %c0_5 = arith.constant 0 : index
    %2 = vector.load %arg2[%c0_3, %c1, %c0_4, %c0_5] : memref<1x4x16x16xf32, #tpu.memory_space<vmem>>, vector<1x1x16x16xf32>
    %3 = vector.shape_cast %2 : vector<1x1x16x16xf32> to vector<16x16xf32>
    %c0_6 = arith.constant 0 : index
    %c2 = arith.constant 2 : index
    %c0_7 = arith.constant 0 : index
    %c0_8 = arith.constant 0 : index
    %4 = vector.load %arg2[%c0_6, %c2, %c0_7, %c0_8] : memref<1x4x16x16xf32, #tpu.memory_space<vmem>>, vector<1x1x16x16xf32>
    %5 = vector.shape_cast %4 : vector<1x1x16x16xf32> to vector<16x16xf32>
    %c0_9 = arith.constant 0 : index
    %c3 = arith.constant 3 : index
    %c0_10 = arith.constant 0 : index
    %c0_11 = arith.constant 0 : index
    %6 = vector.load %arg2[%c0_9, %c3, %c0_10, %c0_11] : memref<1x4x16x16xf32, #tpu.memory_space<vmem>>, vector<1x1x16x16xf32>
    %7 = vector.shape_cast %6 : vector<1x1x16x16xf32> to vector<16x16xf32>
    %c0_12 = arith.constant 0 : index
    %c0_13 = arith.constant 0 : index
    %8 = memref.load %arg3[%c0_12, %c0_13] : memref<4x8xf32, #tpu.memory_space<smem>>
    %9 = vector.broadcast %8 : f32 to vector<16x16xf32>
    %10 = arith.mulf %1, %9 : vector<16x16xf32>
    %c1_14 = arith.constant 1 : index
    %c0_15 = arith.constant 0 : index
    %11 = memref.load %arg3[%c1_14, %c0_15] : memref<4x8xf32, #tpu.memory_space<smem>>
    %12 = vector.broadcast %11 : f32 to vector<16x16xf32>
    %13 = arith.mulf %3, %12 : vector<16x16xf32>
    %14 = arith.addf %10, %13 : vector<16x16xf32>
    %c2_16 = arith.constant 2 : index
    %c0_17 = arith.constant 0 : index
    %15 = memref.load %arg3[%c2_16, %c0_17] : memref<4x8xf32, #tpu.memory_space<smem>>
    %16 = vector.broadcast %15 : f32 to vector<16x16xf32>
    %17 = arith.mulf %5, %16 : vector<16x16xf32>
    %18 = arith.addf %14, %17 : vector<16x16xf32>
    %c3_18 = arith.constant 3 : index
    %c0_19 = arith.constant 0 : index
    %19 = memref.load %arg3[%c3_18, %c0_19] : memref<4x8xf32, #tpu.memory_space<smem>>
    %20 = vector.broadcast %19 : f32 to vector<16x16xf32>
    %21 = arith.mulf %7, %20 : vector<16x16xf32>
    %22 = arith.addf %18, %21 : vector<16x16xf32>
    %c0_20 = arith.constant 0 : index
    %23 = memref.load %arg4[%c0_20] : memref<8xf32, #tpu.memory_space<smem>>
    %24 = vector.broadcast %23 : f32 to vector<16x16xf32>
    %25 = arith.mulf %22, %24 : vector<16x16xf32>
    %c0_21 = arith.constant 0 : index
    %26 = memref.load %arg5[%c0_21] : memref<8xf32, #tpu.memory_space<smem>>
    %27 = vector.broadcast %26 : f32 to vector<16x16xf32>
    %28 = arith.addf %25, %27 : vector<16x16xf32>
    %cst = arith.constant 0.000000e+00 : f32
    %29 = vector.broadcast %cst : f32 to vector<16x16xf32>
    %30 = arith.maximumf %28, %29 : vector<16x16xf32>
    %31 = vector.shape_cast %30 : vector<16x16xf32> to vector<8x2x16xf32>
    %32 = vector.extract_strided_slice %31 {offsets = [0, 0, 0], sizes = [8, 1, 16], strides = [1, 1, 1]} : vector<8x2x16xf32> to vector<8x1x16xf32>
    %33 = vector.shape_cast %32 : vector<8x1x16xf32> to vector<8x16xf32>
    %34 = vector.extract_strided_slice %31 {offsets = [0, 1, 0], sizes = [8, 1, 16], strides = [1, 1, 1]} : vector<8x2x16xf32> to vector<8x1x16xf32>
    %35 = vector.shape_cast %34 : vector<8x1x16xf32> to vector<8x16xf32>
    %36 = arith.maximumf %33, %35 : vector<8x16xf32>
    %37 = tpu.transpose %36, [1, 0] : vector<8x16xf32> -> vector<16x8xf32>
    %38 = vector.shape_cast %37 : vector<16x8xf32> to vector<8x2x8xf32>
    %39 = vector.extract_strided_slice %38 {offsets = [0, 0, 0], sizes = [8, 1, 8], strides = [1, 1, 1]} : vector<8x2x8xf32> to vector<8x1x8xf32>
    %40 = vector.shape_cast %39 : vector<8x1x8xf32> to vector<8x8xf32>
    %41 = vector.extract_strided_slice %38 {offsets = [0, 1, 0], sizes = [8, 1, 8], strides = [1, 1, 1]} : vector<8x2x8xf32> to vector<8x1x8xf32>
    %42 = vector.shape_cast %41 : vector<8x1x8xf32> to vector<8x8xf32>
    %43 = arith.maximumf %40, %42 : vector<8x8xf32>
    %c0_22 = arith.constant 0 : index
    %c1_23 = arith.constant 1 : index
    %44 = memref.load %arg3[%c0_22, %c1_23] : memref<4x8xf32, #tpu.memory_space<smem>>
    %45 = vector.broadcast %44 : f32 to vector<16x16xf32>
    %46 = arith.mulf %1, %45 : vector<16x16xf32>
    %c1_24 = arith.constant 1 : index
    %c1_25 = arith.constant 1 : index
    %47 = memref.load %arg3[%c1_24, %c1_25] : memref<4x8xf32, #tpu.memory_space<smem>>
    %48 = vector.broadcast %47 : f32 to vector<16x16xf32>
    %49 = arith.mulf %3, %48 : vector<16x16xf32>
    %50 = arith.addf %46, %49 : vector<16x16xf32>
    %c2_26 = arith.constant 2 : index
    %c1_27 = arith.constant 1 : index
    %51 = memref.load %arg3[%c2_26, %c1_27] : memref<4x8xf32, #tpu.memory_space<smem>>
    %52 = vector.broadcast %51 : f32 to vector<16x16xf32>
    %53 = arith.mulf %5, %52 : vector<16x16xf32>
    %54 = arith.addf %50, %53 : vector<16x16xf32>
    %c3_28 = arith.constant 3 : index
    %c1_29 = arith.constant 1 : index
    %55 = memref.load %arg3[%c3_28, %c1_29] : memref<4x8xf32, #tpu.memory_space<smem>>
    %56 = vector.broadcast %55 : f32 to vector<16x16xf32>
    %57 = arith.mulf %7, %56 : vector<16x16xf32>
    %58 = arith.addf %54, %57 : vector<16x16xf32>
    %c1_30 = arith.constant 1 : index
    %59 = memref.load %arg4[%c1_30] : memref<8xf32, #tpu.memory_space<smem>>
    %60 = vector.broadcast %59 : f32 to vector<16x16xf32>
    %61 = arith.mulf %58, %60 : vector<16x16xf32>
    %c1_31 = arith.constant 1 : index
    %62 = memref.load %arg5[%c1_31] : memref<8xf32, #tpu.memory_space<smem>>
    %63 = vector.broadcast %62 : f32 to vector<16x16xf32>
    %64 = arith.addf %61, %63 : vector<16x16xf32>
    %cst_32 = arith.constant 0.000000e+00 : f32
    %65 = vector.broadcast %cst_32 : f32 to vector<16x16xf32>
    %66 = arith.maximumf %64, %65 : vector<16x16xf32>
    %67 = vector.shape_cast %66 : vector<16x16xf32> to vector<8x2x16xf32>
    %68 = vector.extract_strided_slice %67 {offsets = [0, 0, 0], sizes = [8, 1, 16], strides = [1, 1, 1]} : vector<8x2x16xf32> to vector<8x1x16xf32>
    %69 = vector.shape_cast %68 : vector<8x1x16xf32> to vector<8x16xf32>
    %70 = vector.extract_strided_slice %67 {offsets = [0, 1, 0], sizes = [8, 1, 16], strides = [1, 1, 1]} : vector<8x2x16xf32> to vector<8x1x16xf32>
    %71 = vector.shape_cast %70 : vector<8x1x16xf32> to vector<8x16xf32>
    %72 = arith.maximumf %69, %71 : vector<8x16xf32>
    %73 = tpu.transpose %72, [1, 0] : vector<8x16xf32> -> vector<16x8xf32>
    %74 = vector.shape_cast %73 : vector<16x8xf32> to vector<8x2x8xf32>
    %75 = vector.extract_strided_slice %74 {offsets = [0, 0, 0], sizes = [8, 1, 8], strides = [1, 1, 1]} : vector<8x2x8xf32> to vector<8x1x8xf32>
    %76 = vector.shape_cast %75 : vector<8x1x8xf32> to vector<8x8xf32>
    %77 = vector.extract_strided_slice %74 {offsets = [0, 1, 0], sizes = [8, 1, 8], strides = [1, 1, 1]} : vector<8x2x8xf32> to vector<8x1x8xf32>
    %78 = vector.shape_cast %77 : vector<8x1x8xf32> to vector<8x8xf32>
    %79 = arith.maximumf %76, %78 : vector<8x8xf32>
    %c0_33 = arith.constant 0 : index
    %c2_34 = arith.constant 2 : index
    %80 = memref.load %arg3[%c0_33, %c2_34] : memref<4x8xf32, #tpu.memory_space<smem>>
    %81 = vector.broadcast %80 : f32 to vector<16x16xf32>
    %82 = arith.mulf %1, %81 : vector<16x16xf32>
    %c1_35 = arith.constant 1 : index
    %c2_36 = arith.constant 2 : index
    %83 = memref.load %arg3[%c1_35, %c2_36] : memref<4x8xf32, #tpu.memory_space<smem>>
    %84 = vector.broadcast %83 : f32 to vector<16x16xf32>
    %85 = arith.mulf %3, %84 : vector<16x16xf32>
    %86 = arith.addf %82, %85 : vector<16x16xf32>
    %c2_37 = arith.constant 2 : index
    %c2_38 = arith.constant 2 : index
    %87 = memref.load %arg3[%c2_37, %c2_38] : memref<4x8xf32, #tpu.memory_space<smem>>
    %88 = vector.broadcast %87 : f32 to vector<16x16xf32>
    %89 = arith.mulf %5, %88 : vector<16x16xf32>
    %90 = arith.addf %86, %89 : vector<16x16xf32>
    %c3_39 = arith.constant 3 : index
    %c2_40 = arith.constant 2 : index
    %91 = memref.load %arg3[%c3_39, %c2_40] : memref<4x8xf32, #tpu.memory_space<smem>>
    %92 = vector.broadcast %91 : f32 to vector<16x16xf32>
    %93 = arith.mulf %7, %92 : vector<16x16xf32>
    %94 = arith.addf %90, %93 : vector<16x16xf32>
    %c2_41 = arith.constant 2 : index
    %95 = memref.load %arg4[%c2_41] : memref<8xf32, #tpu.memory_space<smem>>
    %96 = vector.broadcast %95 : f32 to vector<16x16xf32>
    %97 = arith.mulf %94, %96 : vector<16x16xf32>
    %c2_42 = arith.constant 2 : index
    %98 = memref.load %arg5[%c2_42] : memref<8xf32, #tpu.memory_space<smem>>
    %99 = vector.broadcast %98 : f32 to vector<16x16xf32>
    %100 = arith.addf %97, %99 : vector<16x16xf32>
    %cst_43 = arith.constant 0.000000e+00 : f32
    %101 = vector.broadcast %cst_43 : f32 to vector<16x16xf32>
    %102 = arith.maximumf %100, %101 : vector<16x16xf32>
    %103 = vector.shape_cast %102 : vector<16x16xf32> to vector<8x2x16xf32>
    %104 = vector.extract_strided_slice %103 {offsets = [0, 0, 0], sizes = [8, 1, 16], strides = [1, 1, 1]} : vector<8x2x16xf32> to vector<8x1x16xf32>
    %105 = vector.shape_cast %104 : vector<8x1x16xf32> to vector<8x16xf32>
    %106 = vector.extract_strided_slice %103 {offsets = [0, 1, 0], sizes = [8, 1, 16], strides = [1, 1, 1]} : vector<8x2x16xf32> to vector<8x1x16xf32>
    %107 = vector.shape_cast %106 : vector<8x1x16xf32> to vector<8x16xf32>
    %108 = arith.maximumf %105, %107 : vector<8x16xf32>
    %109 = tpu.transpose %108, [1, 0] : vector<8x16xf32> -> vector<16x8xf32>
    %110 = vector.shape_cast %109 : vector<16x8xf32> to vector<8x2x8xf32>
    %111 = vector.extract_strided_slice %110 {offsets = [0, 0, 0], sizes = [8, 1, 8], strides = [1, 1, 1]} : vector<8x2x8xf32> to vector<8x1x8xf32>
    %112 = vector.shape_cast %111 : vector<8x1x8xf32> to vector<8x8xf32>
    %113 = vector.extract_strided_slice %110 {offsets = [0, 1, 0], sizes = [8, 1, 8], strides = [1, 1, 1]} : vector<8x2x8xf32> to vector<8x1x8xf32>
    %114 = vector.shape_cast %113 : vector<8x1x8xf32> to vector<8x8xf32>
    %115 = arith.maximumf %112, %114 : vector<8x8xf32>
    %c0_44 = arith.constant 0 : index
    %c3_45 = arith.constant 3 : index
    %116 = memref.load %arg3[%c0_44, %c3_45] : memref<4x8xf32, #tpu.memory_space<smem>>
    %117 = vector.broadcast %116 : f32 to vector<16x16xf32>
    %118 = arith.mulf %1, %117 : vector<16x16xf32>
    %c1_46 = arith.constant 1 : index
    %c3_47 = arith.constant 3 : index
    %119 = memref.load %arg3[%c1_46, %c3_47] : memref<4x8xf32, #tpu.memory_space<smem>>
    %120 = vector.broadcast %119 : f32 to vector<16x16xf32>
    %121 = arith.mulf %3, %120 : vector<16x16xf32>
    %122 = arith.addf %118, %121 : vector<16x16xf32>
    %c2_48 = arith.constant 2 : index
    %c3_49 = arith.constant 3 : index
    %123 = memref.load %arg3[%c2_48, %c3_49] : memref<4x8xf32, #tpu.memory_space<smem>>
    %124 = vector.broadcast %123 : f32 to vector<16x16xf32>
    %125 = arith.mulf %5, %124 : vector<16x16xf32>
    %126 = arith.addf %122, %125 : vector<16x16xf32>
    %c3_50 = arith.constant 3 : index
    %c3_51 = arith.constant 3 : index
    %127 = memref.load %arg3[%c3_50, %c3_51] : memref<4x8xf32, #tpu.memory_space<smem>>
    %128 = vector.broadcast %127 : f32 to vector<16x16xf32>
    %129 = arith.mulf %7, %128 : vector<16x16xf32>
    %130 = arith.addf %126, %129 : vector<16x16xf32>
    %c3_52 = arith.constant 3 : index
    %131 = memref.load %arg4[%c3_52] : memref<8xf32, #tpu.memory_space<smem>>
    %132 = vector.broadcast %131 : f32 to vector<16x16xf32>
    %133 = arith.mulf %130, %132 : vector<16x16xf32>
    %c3_53 = arith.constant 3 : index
    %134 = memref.load %arg5[%c3_53] : memref<8xf32, #tpu.memory_space<smem>>
    %135 = vector.broadcast %134 : f32 to vector<16x16xf32>
    %136 = arith.addf %133, %135 : vector<16x16xf32>
    %cst_54 = arith.constant 0.000000e+00 : f32
    %137 = vector.broadcast %cst_54 : f32 to vector<16x16xf32>
    %138 = arith.maximumf %136, %137 : vector<16x16xf32>
    %139 = vector.shape_cast %138 : vector<16x16xf32> to vector<8x2x16xf32>
    %140 = vector.extract_strided_slice %139 {offsets = [0, 0, 0], sizes = [8, 1, 16], strides = [1, 1, 1]} : vector<8x2x16xf32> to vector<8x1x16xf32>
    %141 = vector.shape_cast %140 : vector<8x1x16xf32> to vector<8x16xf32>
    %142 = vector.extract_strided_slice %139 {offsets = [0, 1, 0], sizes = [8, 1, 16], strides = [1, 1, 1]} : vector<8x2x16xf32> to vector<8x1x16xf32>
    %143 = vector.shape_cast %142 : vector<8x1x16xf32> to vector<8x16xf32>
    %144 = arith.maximumf %141, %143 : vector<8x16xf32>
    %145 = tpu.transpose %144, [1, 0] : vector<8x16xf32> -> vector<16x8xf32>
    %146 = vector.shape_cast %145 : vector<16x8xf32> to vector<8x2x8xf32>
    %147 = vector.extract_strided_slice %146 {offsets = [0, 0, 0], sizes = [8, 1, 8], strides = [1, 1, 1]} : vector<8x2x8xf32> to vector<8x1x8xf32>
    %148 = vector.shape_cast %147 : vector<8x1x8xf32> to vector<8x8xf32>
    %149 = vector.extract_strided_slice %146 {offsets = [0, 1, 0], sizes = [8, 1, 8], strides = [1, 1, 1]} : vector<8x2x8xf32> to vector<8x1x8xf32>
    %150 = vector.shape_cast %149 : vector<8x1x8xf32> to vector<8x8xf32>
    %151 = arith.maximumf %148, %150 : vector<8x8xf32>
    %c0_55 = arith.constant 0 : index
    %c4 = arith.constant 4 : index
    %152 = memref.load %arg3[%c0_55, %c4] : memref<4x8xf32, #tpu.memory_space<smem>>
    %153 = vector.broadcast %152 : f32 to vector<16x16xf32>
    %154 = arith.mulf %1, %153 : vector<16x16xf32>
    %c1_56 = arith.constant 1 : index
    %c4_57 = arith.constant 4 : index
    %155 = memref.load %arg3[%c1_56, %c4_57] : memref<4x8xf32, #tpu.memory_space<smem>>
    %156 = vector.broadcast %155 : f32 to vector<16x16xf32>
    %157 = arith.mulf %3, %156 : vector<16x16xf32>
    %158 = arith.addf %154, %157 : vector<16x16xf32>
    %c2_58 = arith.constant 2 : index
    %c4_59 = arith.constant 4 : index
    %159 = memref.load %arg3[%c2_58, %c4_59] : memref<4x8xf32, #tpu.memory_space<smem>>
    %160 = vector.broadcast %159 : f32 to vector<16x16xf32>
    %161 = arith.mulf %5, %160 : vector<16x16xf32>
    %162 = arith.addf %158, %161 : vector<16x16xf32>
    %c3_60 = arith.constant 3 : index
    %c4_61 = arith.constant 4 : index
    %163 = memref.load %arg3[%c3_60, %c4_61] : memref<4x8xf32, #tpu.memory_space<smem>>
    %164 = vector.broadcast %163 : f32 to vector<16x16xf32>
    %165 = arith.mulf %7, %164 : vector<16x16xf32>
    %166 = arith.addf %162, %165 : vector<16x16xf32>
    %c4_62 = arith.constant 4 : index
    %167 = memref.load %arg4[%c4_62] : memref<8xf32, #tpu.memory_space<smem>>
    %168 = vector.broadcast %167 : f32 to vector<16x16xf32>
    %169 = arith.mulf %166, %168 : vector<16x16xf32>
    %c4_63 = arith.constant 4 : index
    %170 = memref.load %arg5[%c4_63] : memref<8xf32, #tpu.memory_space<smem>>
    %171 = vector.broadcast %170 : f32 to vector<16x16xf32>
    %172 = arith.addf %169, %171 : vector<16x16xf32>
    %cst_64 = arith.constant 0.000000e+00 : f32
    %173 = vector.broadcast %cst_64 : f32 to vector<16x16xf32>
    %174 = arith.maximumf %172, %173 : vector<16x16xf32>
    %175 = vector.shape_cast %174 : vector<16x16xf32> to vector<8x2x16xf32>
    %176 = vector.extract_strided_slice %175 {offsets = [0, 0, 0], sizes = [8, 1, 16], strides = [1, 1, 1]} : vector<8x2x16xf32> to vector<8x1x16xf32>
    %177 = vector.shape_cast %176 : vector<8x1x16xf32> to vector<8x16xf32>
    %178 = vector.extract_strided_slice %175 {offsets = [0, 1, 0], sizes = [8, 1, 16], strides = [1, 1, 1]} : vector<8x2x16xf32> to vector<8x1x16xf32>
    %179 = vector.shape_cast %178 : vector<8x1x16xf32> to vector<8x16xf32>
    %180 = arith.maximumf %177, %179 : vector<8x16xf32>
    %181 = tpu.transpose %180, [1, 0] : vector<8x16xf32> -> vector<16x8xf32>
    %182 = vector.shape_cast %181 : vector<16x8xf32> to vector<8x2x8xf32>
    %183 = vector.extract_strided_slice %182 {offsets = [0, 0, 0], sizes = [8, 1, 8], strides = [1, 1, 1]} : vector<8x2x8xf32> to vector<8x1x8xf32>
    %184 = vector.shape_cast %183 : vector<8x1x8xf32> to vector<8x8xf32>
    %185 = vector.extract_strided_slice %182 {offsets = [0, 1, 0], sizes = [8, 1, 8], strides = [1, 1, 1]} : vector<8x2x8xf32> to vector<8x1x8xf32>
    %186 = vector.shape_cast %185 : vector<8x1x8xf32> to vector<8x8xf32>
    %187 = arith.maximumf %184, %186 : vector<8x8xf32>
    %c0_65 = arith.constant 0 : index
    %c5 = arith.constant 5 : index
    %188 = memref.load %arg3[%c0_65, %c5] : memref<4x8xf32, #tpu.memory_space<smem>>
    %189 = vector.broadcast %188 : f32 to vector<16x16xf32>
    %190 = arith.mulf %1, %189 : vector<16x16xf32>
    %c1_66 = arith.constant 1 : index
    %c5_67 = arith.constant 5 : index
    %191 = memref.load %arg3[%c1_66, %c5_67] : memref<4x8xf32, #tpu.memory_space<smem>>
    %192 = vector.broadcast %191 : f32 to vector<16x16xf32>
    %193 = arith.mulf %3, %192 : vector<16x16xf32>
    %194 = arith.addf %190, %193 : vector<16x16xf32>
    %c2_68 = arith.constant 2 : index
    %c5_69 = arith.constant 5 : index
    %195 = memref.load %arg3[%c2_68, %c5_69] : memref<4x8xf32, #tpu.memory_space<smem>>
    %196 = vector.broadcast %195 : f32 to vector<16x16xf32>
    %197 = arith.mulf %5, %196 : vector<16x16xf32>
    %198 = arith.addf %194, %197 : vector<16x16xf32>
    %c3_70 = arith.constant 3 : index
    %c5_71 = arith.constant 5 : index
    %199 = memref.load %arg3[%c3_70, %c5_71] : memref<4x8xf32, #tpu.memory_space<smem>>
    %200 = vector.broadcast %199 : f32 to vector<16x16xf32>
    %201 = arith.mulf %7, %200 : vector<16x16xf32>
    %202 = arith.addf %198, %201 : vector<16x16xf32>
    %c5_72 = arith.constant 5 : index
    %203 = memref.load %arg4[%c5_72] : memref<8xf32, #tpu.memory_space<smem>>
    %204 = vector.broadcast %203 : f32 to vector<16x16xf32>
    %205 = arith.mulf %202, %204 : vector<16x16xf32>
    %c5_73 = arith.constant 5 : index
    %206 = memref.load %arg5[%c5_73] : memref<8xf32, #tpu.memory_space<smem>>
    %207 = vector.broadcast %206 : f32 to vector<16x16xf32>
    %208 = arith.addf %205, %207 : vector<16x16xf32>
    %cst_74 = arith.constant 0.000000e+00 : f32
    %209 = vector.broadcast %cst_74 : f32 to vector<16x16xf32>
    %210 = arith.maximumf %208, %209 : vector<16x16xf32>
    %211 = vector.shape_cast %210 : vector<16x16xf32> to vector<8x2x16xf32>
    %212 = vector.extract_strided_slice %211 {offsets = [0, 0, 0], sizes = [8, 1, 16], strides = [1, 1, 1]} : vector<8x2x16xf32> to vector<8x1x16xf32>
    %213 = vector.shape_cast %212 : vector<8x1x16xf32> to vector<8x16xf32>
    %214 = vector.extract_strided_slice %211 {offsets = [0, 1, 0], sizes = [8, 1, 16], strides = [1, 1, 1]} : vector<8x2x16xf32> to vector<8x1x16xf32>
    %215 = vector.shape_cast %214 : vector<8x1x16xf32> to vector<8x16xf32>
    %216 = arith.maximumf %213, %215 : vector<8x16xf32>
    %217 = tpu.transpose %216, [1, 0] : vector<8x16xf32> -> vector<16x8xf32>
    %218 = vector.shape_cast %217 : vector<16x8xf32> to vector<8x2x8xf32>
    %219 = vector.extract_strided_slice %218 {offsets = [0, 0, 0], sizes = [8, 1, 8], strides = [1, 1, 1]} : vector<8x2x8xf32> to vector<8x1x8xf32>
    %220 = vector.shape_cast %219 : vector<8x1x8xf32> to vector<8x8xf32>
    %221 = vector.extract_strided_slice %218 {offsets = [0, 1, 0], sizes = [8, 1, 8], strides = [1, 1, 1]} : vector<8x2x8xf32> to vector<8x1x8xf32>
    %222 = vector.shape_cast %221 : vector<8x1x8xf32> to vector<8x8xf32>
    %223 = arith.maximumf %220, %222 : vector<8x8xf32>
    %c0_75 = arith.constant 0 : index
    %c6 = arith.constant 6 : index
    %224 = memref.load %arg3[%c0_75, %c6] : memref<4x8xf32, #tpu.memory_space<smem>>
    %225 = vector.broadcast %224 : f32 to vector<16x16xf32>
    %226 = arith.mulf %1, %225 : vector<16x16xf32>
    %c1_76 = arith.constant 1 : index
    %c6_77 = arith.constant 6 : index
    %227 = memref.load %arg3[%c1_76, %c6_77] : memref<4x8xf32, #tpu.memory_space<smem>>
    %228 = vector.broadcast %227 : f32 to vector<16x16xf32>
    %229 = arith.mulf %3, %228 : vector<16x16xf32>
    %230 = arith.addf %226, %229 : vector<16x16xf32>
    %c2_78 = arith.constant 2 : index
    %c6_79 = arith.constant 6 : index
    %231 = memref.load %arg3[%c2_78, %c6_79] : memref<4x8xf32, #tpu.memory_space<smem>>
    %232 = vector.broadcast %231 : f32 to vector<16x16xf32>
    %233 = arith.mulf %5, %232 : vector<16x16xf32>
    %234 = arith.addf %230, %233 : vector<16x16xf32>
    %c3_80 = arith.constant 3 : index
    %c6_81 = arith.constant 6 : index
    %235 = memref.load %arg3[%c3_80, %c6_81] : memref<4x8xf32, #tpu.memory_space<smem>>
    %236 = vector.broadcast %235 : f32 to vector<16x16xf32>
    %237 = arith.mulf %7, %236 : vector<16x16xf32>
    %238 = arith.addf %234, %237 : vector<16x16xf32>
    %c6_82 = arith.constant 6 : index
    %239 = memref.load %arg4[%c6_82] : memref<8xf32, #tpu.memory_space<smem>>
    %240 = vector.broadcast %239 : f32 to vector<16x16xf32>
    %241 = arith.mulf %238, %240 : vector<16x16xf32>
    %c6_83 = arith.constant 6 : index
    %242 = memref.load %arg5[%c6_83] : memref<8xf32, #tpu.memory_space<smem>>
    %243 = vector.broadcast %242 : f32 to vector<16x16xf32>
    %244 = arith.addf %241, %243 : vector<16x16xf32>
    %cst_84 = arith.constant 0.000000e+00 : f32
    %245 = vector.broadcast %cst_84 : f32 to vector<16x16xf32>
    %246 = arith.maximumf %244, %245 : vector<16x16xf32>
    %247 = vector.shape_cast %246 : vector<16x16xf32> to vector<8x2x16xf32>
    %248 = vector.extract_strided_slice %247 {offsets = [0, 0, 0], sizes = [8, 1, 16], strides = [1, 1, 1]} : vector<8x2x16xf32> to vector<8x1x16xf32>
    %249 = vector.shape_cast %248 : vector<8x1x16xf32> to vector<8x16xf32>
    %250 = vector.extract_strided_slice %247 {offsets = [0, 1, 0], sizes = [8, 1, 16], strides = [1, 1, 1]} : vector<8x2x16xf32> to vector<8x1x16xf32>
    %251 = vector.shape_cast %250 : vector<8x1x16xf32> to vector<8x16xf32>
    %252 = arith.maximumf %249, %251 : vector<8x16xf32>
    %253 = tpu.transpose %252, [1, 0] : vector<8x16xf32> -> vector<16x8xf32>
    %254 = vector.shape_cast %253 : vector<16x8xf32> to vector<8x2x8xf32>
    %255 = vector.extract_strided_slice %254 {offsets = [0, 0, 0], sizes = [8, 1, 8], strides = [1, 1, 1]} : vector<8x2x8xf32> to vector<8x1x8xf32>
    %256 = vector.shape_cast %255 : vector<8x1x8xf32> to vector<8x8xf32>
    %257 = vector.extract_strided_slice %254 {offsets = [0, 1, 0], sizes = [8, 1, 8], strides = [1, 1, 1]} : vector<8x2x8xf32> to vector<8x1x8xf32>
    %258 = vector.shape_cast %257 : vector<8x1x8xf32> to vector<8x8xf32>
    %259 = arith.maximumf %256, %258 : vector<8x8xf32>
    %c0_85 = arith.constant 0 : index
    %c7 = arith.constant 7 : index
    %260 = memref.load %arg3[%c0_85, %c7] : memref<4x8xf32, #tpu.memory_space<smem>>
    %261 = vector.broadcast %260 : f32 to vector<16x16xf32>
    %262 = arith.mulf %1, %261 : vector<16x16xf32>
    %c1_86 = arith.constant 1 : index
    %c7_87 = arith.constant 7 : index
    %263 = memref.load %arg3[%c1_86, %c7_87] : memref<4x8xf32, #tpu.memory_space<smem>>
    %264 = vector.broadcast %263 : f32 to vector<16x16xf32>
    %265 = arith.mulf %3, %264 : vector<16x16xf32>
    %266 = arith.addf %262, %265 : vector<16x16xf32>
    %c2_88 = arith.constant 2 : index
    %c7_89 = arith.constant 7 : index
    %267 = memref.load %arg3[%c2_88, %c7_89] : memref<4x8xf32, #tpu.memory_space<smem>>
    %268 = vector.broadcast %267 : f32 to vector<16x16xf32>
    %269 = arith.mulf %5, %268 : vector<16x16xf32>
    %270 = arith.addf %266, %269 : vector<16x16xf32>
    %c3_90 = arith.constant 3 : index
    %c7_91 = arith.constant 7 : index
    %271 = memref.load %arg3[%c3_90, %c7_91] : memref<4x8xf32, #tpu.memory_space<smem>>
    %272 = vector.broadcast %271 : f32 to vector<16x16xf32>
    %273 = arith.mulf %7, %272 : vector<16x16xf32>
    %274 = arith.addf %270, %273 : vector<16x16xf32>
    %c7_92 = arith.constant 7 : index
    %275 = memref.load %arg4[%c7_92] : memref<8xf32, #tpu.memory_space<smem>>
    %276 = vector.broadcast %275 : f32 to vector<16x16xf32>
    %277 = arith.mulf %274, %276 : vector<16x16xf32>
    %c7_93 = arith.constant 7 : index
    %278 = memref.load %arg5[%c7_93] : memref<8xf32, #tpu.memory_space<smem>>
    %279 = vector.broadcast %278 : f32 to vector<16x16xf32>
    %280 = arith.addf %277, %279 : vector<16x16xf32>
    %cst_94 = arith.constant 0.000000e+00 : f32
    %281 = vector.broadcast %cst_94 : f32 to vector<16x16xf32>
    %282 = arith.maximumf %280, %281 : vector<16x16xf32>
    %283 = vector.shape_cast %282 : vector<16x16xf32> to vector<8x2x16xf32>
    %284 = vector.extract_strided_slice %283 {offsets = [0, 0, 0], sizes = [8, 1, 16], strides = [1, 1, 1]} : vector<8x2x16xf32> to vector<8x1x16xf32>
    %285 = vector.shape_cast %284 : vector<8x1x16xf32> to vector<8x16xf32>
    %286 = vector.extract_strided_slice %283 {offsets = [0, 1, 0], sizes = [8, 1, 16], strides = [1, 1, 1]} : vector<8x2x16xf32> to vector<8x1x16xf32>
    %287 = vector.shape_cast %286 : vector<8x1x16xf32> to vector<8x16xf32>
    %288 = arith.maximumf %285, %287 : vector<8x16xf32>
    %289 = tpu.transpose %288, [1, 0] : vector<8x16xf32> -> vector<16x8xf32>
    %290 = vector.shape_cast %289 : vector<16x8xf32> to vector<8x2x8xf32>
    %291 = vector.extract_strided_slice %290 {offsets = [0, 0, 0], sizes = [8, 1, 8], strides = [1, 1, 1]} : vector<8x2x8xf32> to vector<8x1x8xf32>
    %292 = vector.shape_cast %291 : vector<8x1x8xf32> to vector<8x8xf32>
    %293 = vector.extract_strided_slice %290 {offsets = [0, 1, 0], sizes = [8, 1, 8], strides = [1, 1, 1]} : vector<8x2x8xf32> to vector<8x1x8xf32>
    %294 = vector.shape_cast %293 : vector<8x1x8xf32> to vector<8x8xf32>
    %295 = arith.maximumf %292, %294 : vector<8x8xf32>
    %296 = tpu.transpose %43, [1, 0] : vector<8x8xf32> -> vector<8x8xf32>
    %c0_95 = arith.constant 0 : index
    %c0_96 = arith.constant 0 : index
    %c0_97 = arith.constant 0 : index
    %c0_98 = arith.constant 0 : index
    %297 = vector.load %arg6[%c0_95, %c0_96, %c0_97, %c0_98] : memref<1x8x8x8xf32, #tpu.memory_space<vmem>>, vector<1x1x8x8xf32>
    %298 = vector.shape_cast %297 : vector<1x1x8x8xf32> to vector<8x8xf32>
    %299 = vector.shape_cast %296 : vector<8x8xf32> to vector<1x1x8x8xf32>
    tpu.vector_store %arg6[%c0_95, %c0_96, %c0_97, %c0_98], %299 {strides = array<i32>} : memref<1x8x8x8xf32, #tpu.memory_space<vmem>>, vector<1x1x8x8xf32>,
    %300 = tpu.transpose %79, [1, 0] : vector<8x8xf32> -> vector<8x8xf32>
    %c0_99 = arith.constant 0 : index
    %c1_100 = arith.constant 1 : index
    %c0_101 = arith.constant 0 : index
    %c0_102 = arith.constant 0 : index
    %301 = vector.load %arg6[%c0_99, %c1_100, %c0_101, %c0_102] : memref<1x8x8x8xf32, #tpu.memory_space<vmem>>, vector<1x1x8x8xf32>
    %302 = vector.shape_cast %301 : vector<1x1x8x8xf32> to vector<8x8xf32>
    %303 = vector.shape_cast %300 : vector<8x8xf32> to vector<1x1x8x8xf32>
    tpu.vector_store %arg6[%c0_99, %c1_100, %c0_101, %c0_102], %303 {strides = array<i32>} : memref<1x8x8x8xf32, #tpu.memory_space<vmem>>, vector<1x1x8x8xf32>,
    %304 = tpu.transpose %115, [1, 0] : vector<8x8xf32> -> vector<8x8xf32>
    %c0_103 = arith.constant 0 : index
    %c2_104 = arith.constant 2 : index
    %c0_105 = arith.constant 0 : index
    %c0_106 = arith.constant 0 : index
    %305 = vector.load %arg6[%c0_103, %c2_104, %c0_105, %c0_106] : memref<1x8x8x8xf32, #tpu.memory_space<vmem>>, vector<1x1x8x8xf32>
    %306 = vector.shape_cast %305 : vector<1x1x8x8xf32> to vector<8x8xf32>
    %307 = vector.shape_cast %304 : vector<8x8xf32> to vector<1x1x8x8xf32>
    tpu.vector_store %arg6[%c0_103, %c2_104, %c0_105, %c0_106], %307 {strides = array<i32>} : memref<1x8x8x8xf32, #tpu.memory_space<vmem>>, vector<1x1x8x8xf32>,
    %308 = tpu.transpose %151, [1, 0] : vector<8x8xf32> -> vector<8x8xf32>
    %c0_107 = arith.constant 0 : index
    %c3_108 = arith.constant 3 : index
    %c0_109 = arith.constant 0 : index
    %c0_110 = arith.constant 0 : index
    %309 = vector.load %arg6[%c0_107, %c3_108, %c0_109, %c0_110] : memref<1x8x8x8xf32, #tpu.memory_space<vmem>>, vector<1x1x8x8xf32>
    %310 = vector.shape_cast %309 : vector<1x1x8x8xf32> to vector<8x8xf32>
    %311 = vector.shape_cast %308 : vector<8x8xf32> to vector<1x1x8x8xf32>
    tpu.vector_store %arg6[%c0_107, %c3_108, %c0_109, %c0_110], %311 {strides = array<i32>} : memref<1x8x8x8xf32, #tpu.memory_space<vmem>>, vector<1x1x8x8xf32>,
    %312 = tpu.transpose %187, [1, 0] : vector<8x8xf32> -> vector<8x8xf32>
    %c0_111 = arith.constant 0 : index
    %c4_112 = arith.constant 4 : index
    %c0_113 = arith.constant 0 : index
    %c0_114 = arith.constant 0 : index
    %313 = vector.load %arg6[%c0_111, %c4_112, %c0_113, %c0_114] : memref<1x8x8x8xf32, #tpu.memory_space<vmem>>, vector<1x1x8x8xf32>
    %314 = vector.shape_cast %313 : vector<1x1x8x8xf32> to vector<8x8xf32>
    %315 = vector.shape_cast %312 : vector<8x8xf32> to vector<1x1x8x8xf32>
    tpu.vector_store %arg6[%c0_111, %c4_112, %c0_113, %c0_114], %315 {strides = array<i32>} : memref<1x8x8x8xf32, #tpu.memory_space<vmem>>, vector<1x1x8x8xf32>,
    %316 = tpu.transpose %223, [1, 0] : vector<8x8xf32> -> vector<8x8xf32>
    %c0_115 = arith.constant 0 : index
    %c5_116 = arith.constant 5 : index
    %c0_117 = arith.constant 0 : index
    %c0_118 = arith.constant 0 : index
    %317 = vector.load %arg6[%c0_115, %c5_116, %c0_117, %c0_118] : memref<1x8x8x8xf32, #tpu.memory_space<vmem>>, vector<1x1x8x8xf32>
    %318 = vector.shape_cast %317 : vector<1x1x8x8xf32> to vector<8x8xf32>
    %319 = vector.shape_cast %316 : vector<8x8xf32> to vector<1x1x8x8xf32>
    tpu.vector_store %arg6[%c0_115, %c5_116, %c0_117, %c0_118], %319 {strides = array<i32>} : memref<1x8x8x8xf32, #tpu.memory_space<vmem>>, vector<1x1x8x8xf32>,
    %320 = tpu.transpose %259, [1, 0] : vector<8x8xf32> -> vector<8x8xf32>
    %c0_119 = arith.constant 0 : index
    %c6_120 = arith.constant 6 : index
    %c0_121 = arith.constant 0 : index
    %c0_122 = arith.constant 0 : index
    %321 = vector.load %arg6[%c0_119, %c6_120, %c0_121, %c0_122] : memref<1x8x8x8xf32, #tpu.memory_space<vmem>>, vector<1x1x8x8xf32>
    %322 = vector.shape_cast %321 : vector<1x1x8x8xf32> to vector<8x8xf32>
    %323 = vector.shape_cast %320 : vector<8x8xf32> to vector<1x1x8x8xf32>
    tpu.vector_store %arg6[%c0_119, %c6_120, %c0_121, %c0_122], %323 {strides = array<i32>} : memref<1x8x8x8xf32, #tpu.memory_space<vmem>>, vector<1x1x8x8xf32>,
    %324 = tpu.transpose %295, [1, 0] : vector<8x8xf32> -> vector<8x8xf32>
    %c0_123 = arith.constant 0 : index
    %c7_124 = arith.constant 7 : index
    %c0_125 = arith.constant 0 : index
    %c0_126 = arith.constant 0 : index
    %325 = vector.load %arg6[%c0_123, %c7_124, %c0_125, %c0_126] : memref<1x8x8x8xf32, #tpu.memory_space<vmem>>, vector<1x1x8x8xf32>
    %326 = vector.shape_cast %325 : vector<1x1x8x8xf32> to vector<8x8xf32>
    %327 = vector.shape_cast %324 : vector<8x8xf32> to vector<1x1x8x8xf32>
    tpu.vector_store %arg6[%c0_123, %c7_124, %c0_125, %c0_126], %327 {strides = array<i32>} : memref<1x8x8x8xf32, #tpu.memory_space<vmem>>, vector<1x1x8x8xf32>,
    return
  }
  func.func @transform_0(%arg0: i32, %arg1: i32) -> (i32, i32, i32, i32) {
    %c0_i32 = arith.constant 0 : i32
    %c0_i32_0 = arith.constant 0 : i32
    %c0_i32_1 = arith.constant 0 : i32
    return %arg0, %c0_i32, %arg1, %c0_i32_0 : i32, i32, i32, i32
  }
  func.func @transform_1(%arg0: i32, %arg1: i32) -> (i32, i32) {
    %c0_i32 = arith.constant 0 : i32
    %c0_i32_0 = arith.constant 0 : i32
    %c0_i32_1 = arith.constant 0 : i32
    return %c0_i32, %c0_i32_0 : i32, i32
  }
  func.func @transform_2(%arg0: i32, %arg1: i32) -> i32 {
    %c0_i32 = arith.constant 0 : i32
    %c0_i32_0 = arith.constant 0 : i32
    return %c0_i32 : i32
  }
  func.func @transform_3(%arg0: i32, %arg1: i32) -> i32 {
    %c0_i32 = arith.constant 0 : i32
    %c0_i32_0 = arith.constant 0 : i32
    return %c0_i32 : i32
  }
  func.func @transform_4(%arg0: i32, %arg1: i32) -> (i32, i32, i32, i32) {
    %c0_i32 = arith.constant 0 : i32
    %c0_i32_0 = arith.constant 0 : i32
    %c0_i32_1 = arith.constant 0 : i32
    return %arg0, %c0_i32, %arg1, %c0_i32_0 : i32, i32, i32, i32
  }
}

</mosaic_0001>

<llo_original>
// kernel: tpu_custom_call.1
$region0: #{tpu_custom_call.1}
  #allocation0 [shape = 'u32[]', space=smem, size = 0x4, offset = 0x4, fixed_abs, tag = 'smem constant byte address 0x4 - core index']
  #allocation1 [shape = 'u32[144,128]{1,0:T(1,128)}', space=vmem, size = 0x12000, scoped, tag = 'internal scratch']
  %s0 = inlined_call_operand.hbm [shape: f32[2,4,16,16], index: 0, kind: input, shape index: {}]
  %s1 = inlined_call_operand.hbm [shape: f32[4,8], index: 1, kind: input, shape index: {}]
  %s2 = inlined_call_operand.vmem [shape: f32[8], index: 2, kind: input, shape index: {}]
  %s3 = inlined_call_operand.vmem [shape: f32[8], index: 3, kind: input, shape index: {}]
  %s4 = inlined_call_operand.hbm [shape: f32[2,8,8,8], index: 4, kind: output, shape index: {}]
  %s5 = sld [smem:[#allocation0]]
  $region65: #{tpu_custom_call.1} parent=0
    _
  %s7 = ssub.s32 1, %s5
  %s8 = scalar_select 0, %s7, %s5
  $region1: #{tpu_custom_call.1} parent=0
    #allocation2 [shape = 'u8[65536]{0}', space=vmem, size = 0x10000, scoped, tag = 'input window, operand 0']
    #allocation3 [shape = 's32[2]{0}', space=sflag, size = 0x8, scoped, tag = 'scoped memory for tpu_custom_call.1']
    #allocation4 [shape = 's32[2]{0}', space=sflag, size = 0x8, scoped, tag = 'scoped memory for tpu_custom_call.1']
    #allocation5 [shape = 's32[2]{0}', space=sflag, size = 0x8, scoped, tag = 'scoped memory for tpu_custom_call.1']
    #allocation6 [shape = 's32[2]{0}', space=sflag, size = 0x8, scoped, tag = 'scoped memory for tpu_custom_call.1']
    #allocation7 [shape = 'u8[2048]{0}', space=smem, size = 0x800, scoped, tag = 'input window, operand 1, single buffered']
    #allocation8 [shape = 'u8[512]{0}', space=smem, size = 0x200, scoped, tag = 'input window, operand 2, single buffered']
    #allocation9 [shape = 'u8[512]{0}', space=smem, size = 0x200, scoped, tag = 'input window, operand 3, single buffered']
    #allocation10 [shape = 's32[1]{0}', space=sflag, size = 0x4, scoped, tag = 'scoped memory for tpu_custom_call.1']
    #allocation11 [shape = 'u8[65536]{0}', space=vmem, size = 0x10000, scoped, tag = 'output window, operand 0']
    %9 = vsyncpa [#allocation3], 0
    %s10 = scalar_lea.sflag [#allocation3], 1
    %11 = vsyncpa %s10, 0
    %12 = vsyncpa [#allocation5], 0
    %13 = vsyncpa [#allocation6], 0
    %14 = vsyncpa [#allocation10], 0
    %15 = vsyncpa [#allocation4], 0
    %s16 = scalar_lea.sflag [#allocation4], 1
    %17 = vsyncpa %s16, 0
    loop: start=0, step=1, limit=4
    $region2: #{tpu_custom_call.1} parent=1 // loop_pre_header
      _
    $region3: #{tpu_custom_call.1} parent=1 // loop_header
      %s19 = sphi 0, %s23
      %p20 = scmp.ge.s32.totalorder %s19, 4
      %s26 = sphi 0, %s38
      %s27 = sphi 0, %s34
      %s28 = sphi 0, %s26
      %s29 = sphi 0, %s27
      %s30 = sphi 0, %s28
      %s31 = sphi 0, %s29
      %s43 = sphi 0, %s45
      %s46 = sphi 0, %s43
      %s47 = sphi 0, %s46
      %s63 = sphi 0, %s47
      %s67 = sphi 0, %s67
      %s69 = sphi 0, %s67
      %s70 = sphi 0, %s69
      %s84 = sphi 0, %s70
      %s88 = sphi 0, %s88
      %s90 = sphi 0, %s88
      %s91 = sphi 0, %s90
      %s105 = sphi 0, %s91
      %s109 = sphi 0, %s109
      %s111 = sphi 0, %s109
      %s112 = sphi 0, %s111
      %s126 = sphi 0, %s112
      %s134 = sphi 0, %s136
      %s137 = sphi 0, %s134
      %s138 = sphi 0, %s137
      %s154 = sphi 0, %s138
    $region4: #{tpu_custom_call.1} parent=1 // loop_header_branch
      %22 = sbr.rel (%p20) target = $region8
    $region5: #{tpu_custom_call.1} parent=1 // loop_body
      %s24 = ssub.s32 %s19, 1
      %s25 = ssub.s32 %s19, 2
      %s32 = sadd.s32 1, %s27
      %p33 = scmp.ge.s32.totalorder %s32, 1
      %s34 = scalar_select %p33, 0, %s32
      %s35 = sadd.s32 1, %s26
      %s36 = scalar_select %p33, %s35, %s26
      %p37 = scmp.ge.s32.totalorder %s36, 2
      %s38 = scalar_select %p37, 0, %s36
      %s39 = ssub.s32 %s26, %s38
      %s40 = ssub.s32 %s27, %s34
      %s41 = sor.u32 %s39, %s40
      %p42 = scmp.eq.s32.totalorder %s41, 0
      %s44 = sadd.s32 %s43, 1
      %s45 = scalar_select %p42, %s43, %s44
      %p48 = pneg %p42
      %p49 = scmp.eq.s32.totalorder %s19, 1
      %p50 = por %p48, %p49
      %p51 = scmp.ne.s32.totalorder %s43, %s46
      %p52 = scmp.eq.s32.totalorder %s19, 0
      %p53 = por %p51, %p52
      %p54 = scmp.ne.s32.totalorder %s43, %s46
      %p55 = scmp.eq.s32.totalorder %s24, 1
      %p56 = por %p54, %p55
      %p57 = scmp.ne.s32.totalorder %s46, %s47
      %p58 = scmp.eq.s32.totalorder %s24, 0
      %p59 = por %p57, %p58
      %p60 = scmp.ne.s32.totalorder %s46, %s47
      %p61 = scmp.eq.s32.totalorder %s25, 1
      %p62 = por %p60, %p61
      %p64 = scmp.ne.s32.totalorder %s47, %s63
      %p65 = scmp.eq.s32.totalorder %s25, 0
      %p66 = por %p64, %p65
      %s68 = sadd.s32 %s67, 1
      %p71 = scmp.eq.s32.totalorder %s19, 1
      %p72 = scmp.ne.s32.totalorder %s67, %s69
      %p73 = scmp.eq.s32.totalorder %s19, 0
      %p74 = por %p72, %p73
      %p75 = scmp.ne.s32.totalorder %s67, %s69
      %p76 = scmp.eq.s32.totalorder %s24, 1
      %p77 = por %p75, %p76
      %p78 = scmp.ne.s32.totalorder %s69, %s70
      %p79 = scmp.eq.s32.totalorder %s24, 0
      %p80 = por %p78, %p79
      %p81 = scmp.ne.s32.totalorder %s69, %s70
      %p82 = scmp.eq.s32.totalorder %s25, 1
      %p83 = por %p81, %p82
      %p85 = scmp.ne.s32.totalorder %s70, %s84
      %p86 = scmp.eq.s32.totalorder %s25, 0
      %p87 = por %p85, %p86
      %s89 = sadd.s32 %s88, 1
      %p92 = scmp.eq.s32.totalorder %s19, 1
      %p93 = scmp.ne.s32.totalorder %s88, %s90
      %p94 = scmp.eq.s32.totalorder %s19, 0
      %p95 = por %p93, %p94
      %p96 = scmp.ne.s32.totalorder %s88, %s90
      %p97 = scmp.eq.s32.totalorder %s24, 1
      %p98 = por %p96, %p97
      %p99 = scmp.ne.s32.totalorder %s90, %s91
      %p100 = scmp.eq.s32.totalorder %s24, 0
      %p101 = por %p99, %p100
      %p102 = scmp.ne.s32.totalorder %s90, %s91
      %p103 = scmp.eq.s32.totalorder %s25, 1
      %p104 = por %p102, %p103
      %p106 = scmp.ne.s32.totalorder %s91, %s105
      %p107 = scmp.eq.s32.totalorder %s25, 0
      %p108 = por %p106, %p107
      %s110 = sadd.s32 %s109, 1
      %p113 = scmp.eq.s32.totalorder %s19, 1
      %p114 = scmp.ne.s32.totalorder %s109, %s111
      %p115 = scmp.eq.s32.totalorder %s19, 0
      %p116 = por %p114, %p115
      %p117 = scmp.ne.s32.totalorder %s109, %s111
      %p118 = scmp.eq.s32.totalorder %s24, 1
      %p119 = por %p117, %p118
      %p120 = scmp.ne.s32.totalorder %s111, %s112
      %p121 = scmp.eq.s32.totalorder %s24, 0
      %p122 = por %p120, %p121
      %p123 = scmp.ne.s32.totalorder %s111, %s112
      %p124 = scmp.eq.s32.totalorder %s25, 1
      %p125 = por %p123, %p124
      %p127 = scmp.ne.s32.totalorder %s112, %s126
      %p128 = scmp.eq.s32.totalorder %s25, 0
      %p129 = por %p127, %p128
      %s130 = ssub.s32 %s26, %s38
      %s131 = ssub.s32 %s27, %s34
      %s132 = sor.u32 %s130, %s131
      %p133 = scmp.eq.s32.totalorder %s132, 0
      %s135 = sadd.s32 %s134, 1
      %s136 = scalar_select %p133, %s134, %s135
      %p139 = pneg %p133
      %p140 = scmp.eq.s32.totalorder %s19, 1
      %p141 = por %p139, %p140
      %p142 = scmp.ne.s32.totalorder %s134, %s137
      %p143 = scmp.eq.s32.totalorder %s19, 0
      %p144 = por %p142, %p143
      %p145 = scmp.ne.s32.totalorder %s134, %s137
      %p146 = scmp.eq.s32.totalorder %s24, 1
      %p147 = por %p145, %p146
      %p148 = scmp.ne.s32.totalorder %s137, %s138
      %p149 = scmp.eq.s32.totalorder %s24, 0
      %p150 = por %p148, %p149
      %p151 = scmp.ne.s32.totalorder %s137, %s138
      %p152 = scmp.eq.s32.totalorder %s25, 1
      %p153 = por %p151, %p152
      %p155 = scmp.ne.s32.totalorder %s138, %s154
      %p156 = scmp.eq.s32.totalorder %s25, 0
      %p157 = por %p155, %p156
      %p158 = scmp.le.s32.totalorder 1, %s19
      %p159 = scmp.lt.s32.totalorder %s19, 3
      %p160 = pnand %p158, %p159
      %p161 = pneg %p160
      // Predicated region
      $region9: #{tpu_custom_call.1} parent=5 // pred_check
        _
      $region10: #{tpu_custom_call.1} parent=5 // pred_check_branch
        %163 = sbr.rel (%p160) target = $region12
      $region11: #{tpu_custom_call.1} parent=5 // pred_region
        %s164 = ssub.s32 %s19, 1
        // Predicated region
        $region13: #{tpu_custom_call.1} parent=11 // pred_check
          %p165 = pneg %p80
        $region14: #{tpu_custom_call.1} parent=11 // pred_check_branch
          %167 = sbr.rel (%p165) target = $region16
        $region15: #{tpu_custom_call.1} parent=11 // pred_region
          %s169 = ssub.s32 64, 64
          %170 = vsyncadd [#allocation5], %s169
          %173 = dma.hbm_to_smem %s1, 64, [#allocation7], [#allocation5]
        $region16: #{tpu_custom_call.1} parent=11 // pred_fallthru
          _
        // Predicated region
        $region17: #{tpu_custom_call.1} parent=11 // pred_check
          %p174 = pneg %p101
        $region18: #{tpu_custom_call.1} parent=11 // pred_check_branch
          %176 = sbr.rel (%p174) target = $region20
        $region19: #{tpu_custom_call.1} parent=11 // pred_region
          %s178 = ssub.s32 16, 16
          %179 = vsyncadd [#allocation6], %s178
          %s181 = sshll.u32 %s2, 4
          %s182 = int_to_ptr.vmem [resolvable:$true] %s181
          %184 = dma.vmem_to_smem %s182, 16, [#allocation8], [#allocation6]
        $region20: #{tpu_custom_call.1} parent=11 // pred_fallthru
          _
        // Predicated region
        $region21: #{tpu_custom_call.1} parent=11 // pred_check
          %p185 = pneg %p122
        $region22: #{tpu_custom_call.1} parent=11 // pred_check_branch
          %187 = sbr.rel (%p185) target = $region24
        $region23: #{tpu_custom_call.1} parent=11 // pred_region
          %s189 = ssub.s32 16, 16
          %190 = vsyncadd [#allocation10], %s189
          %s192 = sshll.u32 %s3, 4
          %s193 = int_to_ptr.vmem [resolvable:$true] %s192
          %195 = dma.vmem_to_smem %s193, 16, [#allocation9], [#allocation10]
        $region24: #{tpu_custom_call.1} parent=11 // pred_fallthru
          _
      $region12: #{tpu_custom_call.1} parent=5 // pred_fallthru
        _
      %p196 = scmp.lt.s32.totalorder %s19, 2
      // Predicated region
      $region25: #{tpu_custom_call.1} parent=5 // pred_check
        %p197 = pneg %p196
      $region26: #{tpu_custom_call.1} parent=5 // pred_check_branch
        %199 = sbr.rel (%p197) target = $region28
      $region27: #{tpu_custom_call.1} parent=5 // pred_region
        // Predicated region
        $region29: #{tpu_custom_call.1} parent=27 // pred_check
          %p200 = pneg %p53
        $region30: #{tpu_custom_call.1} parent=27 // pred_check_branch
          %202 = sbr.rel (%p200) target = $region32
        $region31: #{tpu_custom_call.1} parent=27 // pred_region
          %s203 = sand.u32 %s43, 1
          %s204 = scalar_lea.sflag [#allocation3], %s203
          %s205 = sand.u32 %s43, 1
          %s206 = smul.addr %s205, 64
          %s207 = scalar_lea.vmem [#allocation2], %s206
          %s208 = smul.u32 2, %s27
          %s210 = ssub.s32 1024, 1024
          %211 = vsyncadd %s204, %s210
          %s212 = smul.addr %s26, 8
          %s213 = sadd.s32 %s208, %s212
          %s214 = smul.addr %s213, 128
          %s215 = scalar_lea.hbm %s0, %s214
          %s216 = sshll.u32 %s207, 4
          %s217 = int_to_ptr.vmem [resolvable:$true] %s216
          %222 = dma.hbm_to_vmem [thread:$0]  %s215, 1024, %s217, %s204, 128, 128, 8
        $region32: #{tpu_custom_call.1} parent=27 // pred_fallthru
          _
      $region28: #{tpu_custom_call.1} parent=5 // pred_fallthru
        _
      %p223 = scmp.le.s32.totalorder 1, %s19
      %p224 = scmp.lt.s32.totalorder %s19, 3
      %p225 = pnand %p223, %p224
      %p226 = pneg %p225
      // Predicated region
      $region33: #{tpu_custom_call.1} parent=5 // pred_check
        _
      $region34: #{tpu_custom_call.1} parent=5 // pred_check_branch
        %228 = sbr.rel (%p225) target = $region36
      $region35: #{tpu_custom_call.1} parent=5 // pred_region
        %s229 = ssub.s32 %s19, 1
        %s230 = sand.u32 %s46, 1
        %s231 = scalar_lea.sflag [#allocation3], %s230
        %s232 = sand.u32 %s46, 1
        %s233 = smul.addr %s232, 64
        %s234 = scalar_lea.vmem [#allocation2], %s233
        // Predicated region
        $region37: #{tpu_custom_call.1} parent=35 // pred_check
          %p235 = pneg %p59
        $region38: #{tpu_custom_call.1} parent=35 // pred_check_branch
          %237 = sbr.rel (%p235) target = $region40
        $region39: #{tpu_custom_call.1} parent=35 // pred_region
          %238 = dma.done %s231, 1024
        $region40: #{tpu_custom_call.1} parent=35 // pred_fallthru
          _
        // Predicated region
        $region41: #{tpu_custom_call.1} parent=35 // pred_check
          %p239 = pneg %p80
        $region42: #{tpu_custom_call.1} parent=35 // pred_check_branch
          %241 = sbr.rel (%p239) target = $region44
        $region43: #{tpu_custom_call.1} parent=35 // pred_region
          %242 = dma.done [#allocation5], 64
        $region44: #{tpu_custom_call.1} parent=35 // pred_fallthru
          _
        // Predicated region
        $region45: #{tpu_custom_call.1} parent=35 // pred_check
          %p243 = pneg %p101
        $region46: #{tpu_custom_call.1} parent=35 // pred_check_branch
          %245 = sbr.rel (%p243) target = $region48
        $region47: #{tpu_custom_call.1} parent=35 // pred_region
          %246 = dma.done [#allocation6], 16
        $region48: #{tpu_custom_call.1} parent=35 // pred_fallthru
          _
        // Predicated region
        $region49: #{tpu_custom_call.1} parent=35 // pred_check
          %p247 = pneg %p122
        $region50: #{tpu_custom_call.1} parent=35 // pred_check_branch
          %249 = sbr.rel (%p247) target = $region52
        $region51: #{tpu_custom_call.1} parent=35 // pred_region
          %250 = dma.done [#allocation10], 16
        $region52: #{tpu_custom_call.1} parent=35 // pred_fallthru
          _
        %251 = sfence
        %s252 = sand.u32 %s46, 1
        %s253 = scalar_lea.sflag [#allocation3], %s252
        %s254 = sand.u32 %s46, 1
        %s255 = smul.addr %s254, 64
        %s256 = scalar_lea.vmem [#allocation2], %s255
        %p257 = pneg %p59
        %p258 = pneg %p56
        %p259 = pneg %p80
        %p260 = pneg %p77
        %p261 = pneg %p101
        %p262 = pneg %p98
        %p263 = pneg %p122
        %p264 = pneg %p119
        %p265 = pneg %p150
        %p266 = pneg %p147
        %s267 = sand.u32 %s137, 1
        %s268 = scalar_lea.sflag [#allocation4], %s267
        %s269 = sand.u32 %s137, 1
        %s270 = smul.addr %s269, 64
        %s271 = scalar_lea.vmem [#allocation11], %s270
        %s272 = smul.u32 2, %s29
        %v273 = vld [vmem:[%s234] sm:$0xff]
        %v274 = vld [vmem:[%s234 + $0x8] sm:$0xff]
        %s275 = scalar_lea.vmem %s234, 16 [#allocation2]
        %v276 = vld [vmem:[%s275] sm:$0xff]
        %v277 = vld [vmem:[%s275 + $0x8] sm:$0xff]
        %s278 = scalar_lea.vmem %s234, 32 [#allocation2]
        %v279 = vld [vmem:[%s278] sm:$0xff]
        %v280 = vld [vmem:[%s278 + $0x8] sm:$0xff]
        %s281 = scalar_lea.vmem %s234, 48 [#allocation2]
        %v282 = vld [vmem:[%s281] sm:$0xff]
        %v283 = vld [vmem:[%s281 + $0x8] sm:$0xff]
        %s284 = sld [smem:[#allocation7]]
        %v285 = vstv %s284
        %v286 = vmul.f32 %v273, %v285
        %v287 = vmul.f32 %v274, %v285
        %s288 = sld [smem:[#allocation7 + $0x80]]
        %v289 = vstv %s288
        %v290 = vmul.f32 %v276, %v289
        %v291 = vmul.f32 %v277, %v289
        %v292 = vadd.f32 %v286, %v290
        %v293 = vadd.f32 %v287, %v291
        %s294 = sld [smem:[#allocation7 + $0x100]]
        %v295 = vstv %s294
        %v296 = vmul.f32 %v279, %v295
        %v297 = vmul.f32 %v280, %v295
        %v298 = vadd.f32 %v292, %v296
        %v299 = vadd.f32 %v293, %v297
        %s300 = sld [smem:[#allocation7 + $0x180]]
        %v301 = vstv %s300
        %v302 = vmul.f32 %v282, %v301
        %v303 = vmul.f32 %v283, %v301
        %v304 = vadd.f32 %v298, %v302
        %v305 = vadd.f32 %v299, %v303
        %s306 = sld [smem:[#allocation8]]
        %v307 = vstv %s306
        %v308 = vmul.f32 %v304, %v307
        %v309 = vmul.f32 %v305, %v307
        %s310 = sld [smem:[#allocation9]]
        %v311 = vstv %s310
        %v312 = vadd.f32 %v308, %v311
        %v313 = vadd.f32 %v309, %v311
        %v314 = vmax.f32 %v312, 0.0
        %v315 = vmax.f32 %v313, 0.0
        %v318 = vcombine.high %v314, %v314
        %v320 = vunpack.c.l.s4 1983009808
        %v321 = vunpack.c.0.s8 %v320
        %v322 = vlaneseq
        %v323 = vshrl.u32 %v322, 7
        %v324 = vsub.s32 %v321, %v323
        %v325 = vrot.slane %v314, %v324
        %v327 = vunpack.c.l.s4 1983009808
        %v328 = vunpack.c.0.s8 %v327
        %v329 = vlaneseq
        %v330 = vshrl.u32 %v329, 7
        %v331 = vsub.s32 %v328, %v330
        %v332 = vrot.slane %v318, %v331
        %v333 = vcombine.high %v325, %v325
        %v334 = vcombine.high %v332, %v332
        %v335 = vcombine.high %v315, %v315
        %v337 = vunpack.c.l.s4 1983009808
        %v338 = vunpack.c.0.s8 %v337
        %v339 = vlaneseq
        %v340 = vshrl.u32 %v339, 7
        %v341 = vsub.s32 %v338, %v340
        %v342 = vrot.slane %v315, %v341
        %v344 = vunpack.c.l.s4 1983009808
        %v345 = vunpack.c.0.s8 %v344
        %v346 = vlaneseq
        %v347 = vshrl.u32 %v346, 7
        %v348 = vsub.s32 %v345, %v347
        %v349 = vrot.slane %v335, %v348
        %v350 = vcombine.high %v342, %v342
        %v351 = vcombine.high %v349, %v349
        %v360 = vrot.slane %v325, 7
        %v361 = vrot.slane %v360, 2
        %v362 = vrot.slane %v333, 7
        %v363 = vrot.slane %v362, 2
        %v364 = vrot.slane %v332, 7
        %v365 = vrot.slane %v364, 2
        %v366 = vrot.slane %v334, 7
        %v367 = vrot.slane %v366, 2
        %v368 = vrot.slane %v342, 7
        %v369 = vrot.slane %v368, 2
        %v370 = vrot.slane %v350, 7
        %v371 = vrot.slane %v370, 2
        %v372 = vrot.slane %v349, 7
        %v373 = vrot.slane %v372, 2
        %v374 = vrot.slane %v351, 7
        %v375 = vrot.slane %v374, 2
        %v384 = vmax.f32 %v325, %v361
        %v385 = vmax.f32 %v333, %v363
        %v386 = vmax.f32 %v332, %v365
        %v387 = vmax.f32 %v334, %v367
        %v388 = vmax.f32 %v342, %v369
        %v389 = vmax.f32 %v350, %v371
        %v390 = vmax.f32 %v349, %v373
        %v391 = vmax.f32 %v351, %v375
        %v400 = vlaneseq
        %v401 = vshrl.u32 %v400, 7
        %v402 = vsub.s32 0, %v401
        %v403 = vrot.slane %v384, %v402
        %v404 = vlaneseq
        %v405 = vshrl.u32 %v404, 7
        %v406 = vsub.s32 0, %v405
        %v407 = vrot.slane %v385, %v406
        %v408 = vlaneseq
        %v409 = vshrl.u32 %v408, 7
        %v410 = vsub.s32 0, %v409
        %v411 = vrot.slane %v386, %v410
        %v412 = vlaneseq
        %v413 = vshrl.u32 %v412, 7
        %v414 = vsub.s32 0, %v413
        %v415 = vrot.slane %v387, %v414
        %v416 = vlaneseq
        %v417 = vshrl.u32 %v416, 7
        %v418 = vsub.s32 0, %v417
        %v419 = vrot.slane %v388, %v418
        %v420 = vlaneseq
        %v421 = vshrl.u32 %v420, 7
        %v422 = vsub.s32 0, %v421
        %v423 = vrot.slane %v389, %v422
        %v424 = vlaneseq
        %v425 = vshrl.u32 %v424, 7
        %v426 = vsub.s32 0, %v425
        %v427 = vrot.slane %v390, %v426
        %v428 = vlaneseq
        %v429 = vshrl.u32 %v428, 7
        %v430 = vsub.s32 0, %v429
        %v431 = vrot.slane %v391, %v430
        %vm432 = vcmask 1041409
        %v433 = vsel %vm432, %v407, %v403
        %vm434 = vcmask 1042434
        %v435 = vsel %vm434, %v411, %v433
        %vm436 = vcmask 1043459
        %v437 = vsel %vm436, %v415, %v435
        %vm438 = vcmask 1044484
        %v439 = vsel %vm438, %v419, %v437
        %vm440 = vcmask 1045509
        %v441 = vsel %vm440, %v423, %v439
        %vm442 = vcmask 1046534
        %v443 = vsel %vm442, %v427, %v441
        %vm444 = vcmask 1047559
        %v445 = vsel %vm444, %v431, %v443
        %447 = vxpose.xlu0.b32.start [1/16] %v445, 128
        %448 = vxpose.xlu0.b32.cont [2/16] 0.0, 128
        %449 = vxpose.xlu0.b32.cont [3/16] 0.0, 128
        %450 = vxpose.xlu0.b32.cont [4/16] 0.0, 128
        %451 = vxpose.xlu0.b32.cont [5/16] 0.0, 128
        %452 = vxpose.xlu0.b32.cont [6/16] 0.0, 128
        %453 = vxpose.xlu0.b32.cont [7/16] 0.0, 128
        %454 = vxpose.xlu0.b32.cont [8/16] 0.0, 128
        %455 = vxpose.xlu0.b32.cont [9/16] 0.0, 128
        %456 = vxpose.xlu0.b32.cont [10/16] 0.0, 128
        %457 = vxpose.xlu0.b32.cont [11/16] 0.0, 128
        %458 = vxpose.xlu0.b32.cont [12/16] 0.0, 128
        %459 = vxpose.xlu0.b32.cont [13/16] 0.0, 128
        %460 = vxpose.xlu0.b32.cont [14/16] 0.0, 128
        %461 = vxpose.xlu0.b32.cont [15/16] 0.0, 128
        %462 = vxpose.xlu0.b32.end [16/16] 0.0, 128
        %v463 = vpop.trf.xlu0
        %v464 = vpop.trf.xlu0
        %v465 = vpop.trf.xlu0
        %v466 = vpop.trf.xlu0
        %v467 = vpop.trf.xlu0
        %v468 = vpop.trf.xlu0
        %v469 = vpop.trf.xlu0
        %v470 = vpop.trf.xlu0
        %v471 = vpop.trf.xlu0
        %v472 = vpop.trf.xlu0
        %v473 = vpop.trf.xlu0
        %v474 = vpop.trf.xlu0
        %v475 = vpop.trf.xlu0
        %v476 = vpop.trf.xlu0
        %v477 = vpop.trf.xlu0
        %v478 = vpop.trf.xlu0
        %v481 = vcombine.high %v463, %v463
        %v483 = vunpack.c.l.s4 1983009808
        %v484 = vunpack.c.0.s8 %v483
        %v485 = vlaneseq
        %v486 = vshrl.u32 %v485, 7
        %v487 = vsub.s32 %v484, %v486
        %v488 = vrot.slane %v463, %v487
        %v490 = vunpack.c.l.s4 1983009808
        %v491 = vunpack.c.0.s8 %v490
        %v492 = vlaneseq
        %v493 = vshrl.u32 %v492, 7
        %v494 = vsub.s32 %v491, %v493
        %v495 = vrot.slane %v481, %v494
        %v496 = vcombine.high %v488, %v488
        %v497 = vcombine.high %v495, %v495
        %v498 = vcombine.high %v464, %v464
        %v500 = vunpack.c.l.s4 1983009808
        %v501 = vunpack.c.0.s8 %v500
        %v502 = vlaneseq
        %v503 = vshrl.u32 %v502, 7
        %v504 = vsub.s32 %v501, %v503
        %v505 = vrot.slane %v464, %v504
        %v507 = vunpack.c.l.s4 1983009808
        %v508 = vunpack.c.0.s8 %v507
        %v509 = vlaneseq
        %v510 = vshrl.u32 %v509, 7
        %v511 = vsub.s32 %v508, %v510
        %v512 = vrot.slane %v498, %v511
        %v513 = vcombine.high %v505, %v505
        %v514 = vcombine.high %v512, %v512
        %v523 = vrot.slane %v488, 7
        %v524 = vrot.slane %v523, 2
        %v525 = vrot.slane %v496, 7
        %v526 = vrot.slane %v525, 2
        %v527 = vrot.slane %v495, 7
        %v528 = vrot.slane %v527, 2
        %v529 = vrot.slane %v497, 7
        %v530 = vrot.slane %v529, 2
        %v531 = vrot.slane %v505, 7
        %v532 = vrot.slane %v531, 2
        %v533 = vrot.slane %v513, 7
        %v534 = vrot.slane %v533, 2
        %v535 = vrot.slane %v512, 7
        %v536 = vrot.slane %v535, 2
        %v537 = vrot.slane %v514, 7
        %v538 = vrot.slane %v537, 2
        %v547 = vmax.f32 %v488, %v524
        %v548 = vmax.f32 %v496, %v526
        %v549 = vmax.f32 %v495, %v528
        %v550 = vmax.f32 %v497, %v530
        %v551 = vmax.f32 %v505, %v532
        %v552 = vmax.f32 %v513, %v534
        %v553 = vmax.f32 %v512, %v536
        %v554 = vmax.f32 %v514, %v538
        %s555 = sld [smem:[#allocation7 + $0x1]]
        %v556 = vstv %s555
        %v557 = vmul.f32 %v273, %v556
        %v558 = vmul.f32 %v274, %v556
        %s559 = sld [smem:[#allocation7 + $0x81]]
        %v560 = vstv %s559
        %v561 = vmul.f32 %v276, %v560
        %v562 = vmul.f32 %v277, %v560
        %v563 = vadd.f32 %v557, %v561
        %v564 = vadd.f32 %v558, %v562
        %s565 = sld [smem:[#allocation7 + $0x101]]
        %v566 = vstv %s565
        %v567 = vmul.f32 %v279, %v566
        %v568 = vmul.f32 %v280, %v566
        %v569 = vadd.f32 %v563, %v567
        %v570 = vadd.f32 %v564, %v568
        %s571 = sld [smem:[#allocation7 + $0x181]]
        %v572 = vstv %s571
        %v573 = vmul.f32 %v282, %v572
        %v574 = vmul.f32 %v283, %v572
        %v575 = vadd.f32 %v569, %v573
        %v576 = vadd.f32 %v570, %v574
        %s577 = sld [smem:[#allocation8 + $0x1]]
        %v578 = vstv %s577
        %v579 = vmul.f32 %v575, %v578
        %v580 = vmul.f32 %v576, %v578
        %s581 = sld [smem:[#allocation9 + $0x1]]
        %v582 = vstv %s581
        %v583 = vadd.f32 %v579, %v582
        %v584 = vadd.f32 %v580, %v582
        %v585 = vmax.f32 %v583, 0.0
        %v586 = vmax.f32 %v584, 0.0
        %v589 = vcombine.high %v585, %v585
        %v591 = vunpack.c.l.s4 1983009808
        %v592 = vunpack.c.0.s8 %v591
        %v593 = vlaneseq
        %v594 = vshrl.u32 %v593, 7
        %v595 = vsub.s32 %v592, %v594
        %v596 = vrot.slane %v585, %v595
        %v598 = vunpack.c.l.s4 1983009808
        %v599 = vunpack.c.0.s8 %v598
        %v600 = vlaneseq
        %v601 = vshrl.u32 %v600, 7
        %v602 = vsub.s32 %v599, %v601
        %v603 = vrot.slane %v589, %v602
        %v604 = vcombine.high %v596, %v596
        %v605 = vcombine.high %v603, %v603
        %v606 = vcombine.high %v586, %v586
        %v608 = vunpack.c.l.s4 1983009808
        %v609 = vunpack.c.0.s8 %v608
        %v610 = vlaneseq
        %v611 = vshrl.u32 %v610, 7
        %v612 = vsub.s32 %v609, %v611
        %v613 = vrot.slane %v586, %v612
        %v615 = vunpack.c.l.s4 1983009808
        %v616 = vunpack.c.0.s8 %v615
        %v617 = vlaneseq
        %v618 = vshrl.u32 %v617, 7
        %v619 = vsub.s32 %v616, %v618
        %v620 = vrot.slane %v606, %v619
        %v621 = vcombine.high %v613, %v613
        %v622 = vcombine.high %v620, %v620
        %v631 = vrot.slane %v596, 7
        %v632 = vrot.slane %v631, 2
        %v633 = vrot.slane %v604, 7
        %v634 = vrot.slane %v633, 2
        %v635 = vrot.slane %v603, 7
        %v636 = vrot.slane %v635, 2
        %v637 = vrot.slane %v605, 7
        %v638 = vrot.slane %v637, 2
        %v639 = vrot.slane %v613, 7
        %v640 = vrot.slane %v639, 2
        %v641 = vrot.slane %v621, 7
        %v642 = vrot.slane %v641, 2
        %v643 = vrot.slane %v620, 7
        %v644 = vrot.slane %v643, 2
        %v645 = vrot.slane %v622, 7
        %v646 = vrot.slane %v645, 2
        %v655 = vmax.f32 %v596, %v632
        %v656 = vmax.f32 %v604, %v634
        %v657 = vmax.f32 %v603, %v636
        %v658 = vmax.f32 %v605, %v638
        %v659 = vmax.f32 %v613, %v640
        %v660 = vmax.f32 %v621, %v642
        %v661 = vmax.f32 %v620, %v644
        %v662 = vmax.f32 %v622, %v646
        %v671 = vlaneseq
        %v672 = vshrl.u32 %v671, 7
        %v673 = vsub.s32 0, %v672
        %v674 = vrot.slane %v655, %v673
        %v675 = vlaneseq
        %v676 = vshrl.u32 %v675, 7
        %v677 = vsub.s32 0, %v676
        %v678 = vrot.slane %v656, %v677
        %v679 = vlaneseq
        %v680 = vshrl.u32 %v679, 7
        %v681 = vsub.s32 0, %v680
        %v682 = vrot.slane %v657, %v681
        %v683 = vlaneseq
        %v684 = vshrl.u32 %v683, 7
        %v685 = vsub.s32 0, %v684
        %v686 = vrot.slane %v658, %v685
        %v687 = vlaneseq
        %v688 = vshrl.u32 %v687, 7
        %v689 = vsub.s32 0, %v688
        %v690 = vrot.slane %v659, %v689
        %v691 = vlaneseq
        %v692 = vshrl.u32 %v691, 7
        %v693 = vsub.s32 0, %v692
        %v694 = vrot.slane %v660, %v693
        %v695 = vlaneseq
        %v696 = vshrl.u32 %v695, 7
        %v697 = vsub.s32 0, %v696
        %v698 = vrot.slane %v661, %v697
        %v699 = vlaneseq
        %v700 = vshrl.u32 %v699, 7
        %v701 = vsub.s32 0, %v700
        %v702 = vrot.slane %v662, %v701
        %v703 = vsel %vm432, %v678, %v674
        %v704 = vsel %vm434, %v682, %v703
        %v705 = vsel %vm436, %v686, %v704
        %v706 = vsel %vm438, %v690, %v705
        %v707 = vsel %vm440, %v694, %v706
        %v708 = vsel %vm442, %v698, %v707
        %v709 = vsel %vm444, %v702, %v708
        %711 = vxpose.xlu0.b32.start [1/16] %v709, 128
        %712 = vxpose.xlu0.b32.cont [2/16] 0.0, 128
        %713 = vxpose.xlu0.b32.cont [3/16] 0.0, 128
        %714 = vxpose.xlu0.b32.cont [4/16] 0.0, 128
        %715 = vxpose.xlu0.b32.cont [5/16] 0.0, 128
        %716 = vxpose.xlu0.b32.cont [6/16] 0.0, 128
        %717 = vxpose.xlu0.b32.cont [7/16] 0.0, 128
        %718 = vxpose.xlu0.b32.cont [8/16] 0.0, 128
        %719 = vxpose.xlu0.b32.cont [9/16] 0.0, 128
        %720 = vxpose.xlu0.b32.cont [10/16] 0.0, 128
        %721 = vxpose.xlu0.b32.cont [11/16] 0.0, 128
        %722 = vxpose.xlu0.b32.cont [12/16] 0.0, 128
        %723 = vxpose.xlu0.b32.cont [13/16] 0.0, 128
        %724 = vxpose.xlu0.b32.cont [14/16] 0.0, 128
        %725 = vxpose.xlu0.b32.cont [15/16] 0.0, 128
        %726 = vxpose.xlu0.b32.end [16/16] 0.0, 128
        %v727 = vpop.trf.xlu0
        %v728 = vpop.trf.xlu0
        %v729 = vpop.trf.xlu0
        %v730 = vpop.trf.xlu0
        %v731 = vpop.trf.xlu0
        %v732 = vpop.trf.xlu0
        %v733 = vpop.trf.xlu0
        %v734 = vpop.trf.xlu0
        %v735 = vpop.trf.xlu0
        %v736 = vpop.trf.xlu0
        %v737 = vpop.trf.xlu0
        %v738 = vpop.trf.xlu0
        %v739 = vpop.trf.xlu0
        %v740 = vpop.trf.xlu0
        %v741 = vpop.trf.xlu0
        %v742 = vpop.trf.xlu0
        %v745 = vcombine.high %v727, %v727
        %v747 = vunpack.c.l.s4 1983009808
        %v748 = vunpack.c.0.s8 %v747
        %v749 = vlaneseq
        %v750 = vshrl.u32 %v749, 7
        %v751 = vsub.s32 %v748, %v750
        %v752 = vrot.slane %v727, %v751
        %v754 = vunpack.c.l.s4 1983009808
        %v755 = vunpack.c.0.s8 %v754
        %v756 = vlaneseq
        %v757 = vshrl.u32 %v756, 7
        %v758 = vsub.s32 %v755, %v757
        %v759 = vrot.slane %v745, %v758
        %v760 = vcombine.high %v752, %v752
        %v761 = vcombine.high %v759, %v759
        %v762 = vcombine.high %v728, %v728
        %v764 = vunpack.c.l.s4 1983009808
        %v765 = vunpack.c.0.s8 %v764
        %v766 = vlaneseq
        %v767 = vshrl.u32 %v766, 7
        %v768 = vsub.s32 %v765, %v767
        %v769 = vrot.slane %v728, %v768
        %v771 = vunpack.c.l.s4 1983009808
        %v772 = vunpack.c.0.s8 %v771
        %v773 = vlaneseq
        %v774 = vshrl.u32 %v773, 7
        %v775 = vsub.s32 %v772, %v774
        %v776 = vrot.slane %v762, %v775
        %v777 = vcombine.high %v769, %v769
        %v778 = vcombine.high %v776, %v776
        %v787 = vrot.slane %v752, 7
        %v788 = vrot.slane %v787, 2
        %v789 = vrot.slane %v760, 7
        %v790 = vrot.slane %v789, 2
        %v791 = vrot.slane %v759, 7
        %v792 = vrot.slane %v791, 2
        %v793 = vrot.slane %v761, 7
        %v794 = vrot.slane %v793, 2
        %v795 = vrot.slane %v769, 7
        %v796 = vrot.slane %v795, 2
        %v797 = vrot.slane %v777, 7
        %v798 = vrot.slane %v797, 2
        %v799 = vrot.slane %v776, 7
        %v800 = vrot.slane %v799, 2
        %v801 = vrot.slane %v778, 7
        %v802 = vrot.slane %v801, 2
        %v811 = vmax.f32 %v752, %v788
        %v812 = vmax.f32 %v760, %v790
        %v813 = vmax.f32 %v759, %v792
        %v814 = vmax.f32 %v761, %v794
        %v815 = vmax.f32 %v769, %v796
        %v816 = vmax.f32 %v777, %v798
        %v817 = vmax.f32 %v776, %v800
        %v818 = vmax.f32 %v778, %v802
        %s819 = sld [smem:[#allocation7 + $0x2]]
        %v820 = vstv %s819
        %v821 = vmul.f32 %v273, %v820
        %v822 = vmul.f32 %v274, %v820
        %s823 = sld [smem:[#allocation7 + $0x82]]
        %v824 = vstv %s823
        %v825 = vmul.f32 %v276, %v824
        %v826 = vmul.f32 %v277, %v824
        %v827 = vadd.f32 %v821, %v825
        %v828 = vadd.f32 %v822, %v826
        %s829 = sld [smem:[#allocation7 + $0x102]]
        %v830 = vstv %s829
        %v831 = vmul.f32 %v279, %v830
        %v832 = vmul.f32 %v280, %v830
        %v833 = vadd.f32 %v827, %v831
        %v834 = vadd.f32 %v828, %v832
        %s835 = sld [smem:[#allocation7 + $0x182]]
        %v836 = vstv %s835
        %v837 = vmul.f32 %v282, %v836
        %v838 = vmul.f32 %v283, %v836
        %v839 = vadd.f32 %v833, %v837
        %v840 = vadd.f32 %v834, %v838
        %s841 = sld [smem:[#allocation8 + $0x2]]
        %v842 = vstv %s841
        %v843 = vmul.f32 %v839, %v842
        %v844 = vmul.f32 %v840, %v842
        %s845 = sld [smem:[#allocation9 + $0x2]]
        %v846 = vstv %s845
        %v847 = vadd.f32 %v843, %v846
        %v848 = vadd.f32 %v844, %v846
        %v849 = vmax.f32 %v847, 0.0
        %v850 = vmax.f32 %v848, 0.0
        %v853 = vcombine.high %v849, %v849
        %v855 = vunpack.c.l.s4 1983009808
        %v856 = vunpack.c.0.s8 %v855
        %v857 = vlaneseq
        %v858 = vshrl.u32 %v857, 7
        %v859 = vsub.s32 %v856, %v858
        %v860 = vrot.slane %v849, %v859
        %v862 = vunpack.c.l.s4 1983009808
        %v863 = vunpack.c.0.s8 %v862
        %v864 = vlaneseq
        %v865 = vshrl.u32 %v864, 7
        %v866 = vsub.s32 %v863, %v865
        %v867 = vrot.slane %v853, %v866
        %v868 = vcombine.high %v860, %v860
        %v869 = vcombine.high %v867, %v867
        %v870 = vcombine.high %v850, %v850
        %v872 = vunpack.c.l.s4 1983009808
        %v873 = vunpack.c.0.s8 %v872
        %v874 = vlaneseq
        %v875 = vshrl.u32 %v874, 7
        %v876 = vsub.s32 %v873, %v875
        %v877 = vrot.slane %v850, %v876
        %v879 = vunpack.c.l.s4 1983009808
        %v880 = vunpack.c.0.s8 %v879
        %v881 = vlaneseq
        %v882 = vshrl.u32 %v881, 7
        %v883 = vsub.s32 %v880, %v882
        %v884 = vrot.slane %v870, %v883
        %v885 = vcombine.high %v877, %v877
        %v886 = vcombine.high %v884, %v884
        %v895 = vrot.slane %v860, 7
        %v896 = vrot.slane %v895, 2
        %v897 = vrot.slane %v868, 7
        %v898 = vrot.slane %v897, 2
        %v899 = vrot.slane %v867, 7
        %v900 = vrot.slane %v899, 2
        %v901 = vrot.slane %v869, 7
        %v902 = vrot.slane %v901, 2
        %v903 = vrot.slane %v877, 7
        %v904 = vrot.slane %v903, 2
        %v905 = vrot.slane %v885, 7
        %v906 = vrot.slane %v905, 2
        %v907 = vrot.slane %v884, 7
        %v908 = vrot.slane %v907, 2
        %v909 = vrot.slane %v886, 7
        %v910 = vrot.slane %v909, 2
        %v919 = vmax.f32 %v860, %v896
        %v920 = vmax.f32 %v868, %v898
        %v921 = vmax.f32 %v867, %v900
        %v922 = vmax.f32 %v869, %v902
        %v923 = vmax.f32 %v877, %v904
        %v924 = vmax.f32 %v885, %v906
        %v925 = vmax.f32 %v884, %v908
        %v926 = vmax.f32 %v886, %v910
        %v935 = vlaneseq
        %v936 = vshrl.u32 %v935, 7
        %v937 = vsub.s32 0, %v936
        %v938 = vrot.slane %v919, %v937
        %v939 = vlaneseq
        %v940 = vshrl.u32 %v939, 7
        %v941 = vsub.s32 0, %v940
        %v942 = vrot.slane %v920, %v941
        %v943 = vlaneseq
        %v944 = vshrl.u32 %v943, 7
        %v945 = vsub.s32 0, %v944
        %v946 = vrot.slane %v921, %v945
        %v947 = vlaneseq
        %v948 = vshrl.u32 %v947, 7
        %v949 = vsub.s32 0, %v948
        %v950 = vrot.slane %v922, %v949
        %v951 = vlaneseq
        %v952 = vshrl.u32 %v951, 7
        %v953 = vsub.s32 0, %v952
        %v954 = vrot.slane %v923, %v953
        %v955 = vlaneseq
        %v956 = vshrl.u32 %v955, 7
        %v957 = vsub.s32 0, %v956
        %v958 = vrot.slane %v924, %v957
        %v959 = vlaneseq
        %v960 = vshrl.u32 %v959, 7
        %v961 = vsub.s32 0, %v960
        %v962 = vrot.slane %v925, %v961
        %v963 = vlaneseq
        %v964 = vshrl.u32 %v963, 7
        %v965 = vsub.s32 0, %v964
        %v966 = vrot.slane %v926, %v965
        %v967 = vsel %vm432, %v942, %v938
        %v968 = vsel %vm434, %v946, %v967
        %v969 = vsel %vm436, %v950, %v968
        %v970 = vsel %vm438, %v954, %v969
        %v971 = vsel %vm440, %v958, %v970
        %v972 = vsel %vm442, %v962, %v971
        %v973 = vsel %vm444, %v966, %v972
        %975 = vxpose.xlu0.b32.start [1/16] %v973, 128
        %976 = vxpose.xlu0.b32.cont [2/16] 0.0, 128
        %977 = vxpose.xlu0.b32.cont [3/16] 0.0, 128
        %978 = vxpose.xlu0.b32.cont [4/16] 0.0, 128
        %979 = vxpose.xlu0.b32.cont [5/16] 0.0, 128
        %980 = vxpose.xlu0.b32.cont [6/16] 0.0, 128
        %981 = vxpose.xlu0.b32.cont [7/16] 0.0, 128
        %982 = vxpose.xlu0.b32.cont [8/16] 0.0, 128
        %983 = vxpose.xlu0.b32.cont [9/16] 0.0, 128
        %984 = vxpose.xlu0.b32.cont [10/16] 0.0, 128
        %985 = vxpose.xlu0.b32.cont [11/16] 0.0, 128
        %986 = vxpose.xlu0.b32.cont [12/16] 0.0, 128
        %987 = vxpose.xlu0.b32.cont [13/16] 0.0, 128
        %988 = vxpose.xlu0.b32.cont [14/16] 0.0, 128
        %989 = vxpose.xlu0.b32.cont [15/16] 0.0, 128
        %990 = vxpose.xlu0.b32.end [16/16] 0.0, 128
        %v991 = vpop.trf.xlu0
        %v992 = vpop.trf.xlu0
        %v993 = vpop.trf.xlu0
        %v994 = vpop.trf.xlu0
        %v995 = vpop.trf.xlu0
        %v996 = vpop.trf.xlu0
        %v997 = vpop.trf.xlu0
        %v998 = vpop.trf.xlu0
        %v999 = vpop.trf.xlu0
        %v1000 = vpop.trf.xlu0
        %v1001 = vpop.trf.xlu0
        %v1002 = vpop.trf.xlu0
        %v1003 = vpop.trf.xlu0
        %v1004 = vpop.trf.xlu0
        %v1005 = vpop.trf.xlu0
        %v1006 = vpop.trf.xlu0
        %v1009 = vcombine.high %v991, %v991
        %v1011 = vunpack.c.l.s4 1983009808
        %v1012 = vunpack.c.0.s8 %v1011
        %v1013 = vlaneseq
        %v1014 = vshrl.u32 %v1013, 7
        %v1015 = vsub.s32 %v1012, %v1014
        %v1016 = vrot.slane %v991, %v1015
        %v1018 = vunpack.c.l.s4 1983009808
        %v1019 = vunpack.c.0.s8 %v1018
        %v1020 = vlaneseq
        %v1021 = vshrl.u32 %v1020, 7
        %v1022 = vsub.s32 %v1019, %v1021
        %v1023 = vrot.slane %v1009, %v1022
        %v1024 = vcombine.high %v1016, %v1016
        %v1025 = vcombine.high %v1023, %v1023
        %v1026 = vcombine.high %v992, %v992
        %v1028 = vunpack.c.l.s4 1983009808
        %v1029 = vunpack.c.0.s8 %v1028
        %v1030 = vlaneseq
        %v1031 = vshrl.u32 %v1030, 7
        %v1032 = vsub.s32 %v1029, %v1031
        %v1033 = vrot.slane %v992, %v1032
        %v1035 = vunpack.c.l.s4 1983009808
        %v1036 = vunpack.c.0.s8 %v1035
        %v1037 = vlaneseq
        %v1038 = vshrl.u32 %v1037, 7
        %v1039 = vsub.s32 %v1036, %v1038
        %v1040 = vrot.slane %v1026, %v1039
        %v1041 = vcombine.high %v1033, %v1033
        %v1042 = vcombine.high %v1040, %v1040
        %v1051 = vrot.slane %v1016, 7
        %v1052 = vrot.slane %v1051, 2
        %v1053 = vrot.slane %v1024, 7
        %v1054 = vrot.slane %v1053, 2
        %v1055 = vrot.slane %v1023, 7
        %v1056 = vrot.slane %v1055, 2
        %v1057 = vrot.slane %v1025, 7
        %v1058 = vrot.slane %v1057, 2
        %v1059 = vrot.slane %v1033, 7
        %v1060 = vrot.slane %v1059, 2
        %v1061 = vrot.slane %v1041, 7
        %v1062 = vrot.slane %v1061, 2
        %v1063 = vrot.slane %v1040, 7
        %v1064 = vrot.slane %v1063, 2
        %v1065 = vrot.slane %v1042, 7
        %v1066 = vrot.slane %v1065, 2
        %v1075 = vmax.f32 %v1016, %v1052
        %v1076 = vmax.f32 %v1024, %v1054
        %v1077 = vmax.f32 %v1023, %v1056
        %v1078 = vmax.f32 %v1025, %v1058
        %v1079 = vmax.f32 %v1033, %v1060
        %v1080 = vmax.f32 %v1041, %v1062
        %v1081 = vmax.f32 %v1040, %v1064
        %v1082 = vmax.f32 %v1042, %v1066
        %s1083 = sld [smem:[#allocation7 + $0x3]]
        %v1084 = vstv %s1083
        %v1085 = vmul.f32 %v273, %v1084
        %v1086 = vmul.f32 %v274, %v1084
        %s1087 = sld [smem:[#allocation7 + $0x83]]
        %v1088 = vstv %s1087
        %v1089 = vmul.f32 %v276, %v1088
        %v1090 = vmul.f32 %v277, %v1088
        %v1091 = vadd.f32 %v1085, %v1089
        %v1092 = vadd.f32 %v1086, %v1090
        %s1093 = sld [smem:[#allocation7 + $0x103]]
        %v1094 = vstv %s1093
        %v1095 = vmul.f32 %v279, %v1094
        %v1096 = vmul.f32 %v280, %v1094
        %v1097 = vadd.f32 %v1091, %v1095
        %v1098 = vadd.f32 %v1092, %v1096
        %s1099 = sld [smem:[#allocation7 + $0x183]]
        %v1100 = vstv %s1099
        %v1101 = vmul.f32 %v282, %v1100
        %v1102 = vmul.f32 %v283, %v1100
        %v1103 = vadd.f32 %v1097, %v1101
        %v1104 = vadd.f32 %v1098, %v1102
        %s1105 = sld [smem:[#allocation8 + $0x3]]
        %v1106 = vstv %s1105
        %v1107 = vmul.f32 %v1103, %v1106
        %v1108 = vmul.f32 %v1104, %v1106
        %s1109 = sld [smem:[#allocation9 + $0x3]]
        %v1110 = vstv %s1109
        %v1111 = vadd.f32 %v1107, %v1110
        %v1112 = vadd.f32 %v1108, %v1110
        %v1113 = vmax.f32 %v1111, 0.0
        %v1114 = vmax.f32 %v1112, 0.0
        %v1117 = vcombine.high %v1113, %v1113
        %v1119 = vunpack.c.l.s4 1983009808
        %v1120 = vunpack.c.0.s8 %v1119
        %v1121 = vlaneseq
        %v1122 = vshrl.u32 %v1121, 7
        %v1123 = vsub.s32 %v1120, %v1122
        %v1124 = vrot.slane %v1113, %v1123
        %v1126 = vunpack.c.l.s4 1983009808
        %v1127 = vunpack.c.0.s8 %v1126
        %v1128 = vlaneseq
        %v1129 = vshrl.u32 %v1128, 7
        %v1130 = vsub.s32 %v1127, %v1129
        %v1131 = vrot.slane %v1117, %v1130
        %v1132 = vcombine.high %v1124, %v1124
        %v1133 = vcombine.high %v1131, %v1131
        %v1134 = vcombine.high %v1114, %v1114
        %v1136 = vunpack.c.l.s4 1983009808
        %v1137 = vunpack.c.0.s8 %v1136
        %v1138 = vlaneseq
        %v1139 = vshrl.u32 %v1138, 7
        %v1140 = vsub.s32 %v1137, %v1139
        %v1141 = vrot.slane %v1114, %v1140
        %v1143 = vunpack.c.l.s4 1983009808
        %v1144 = vunpack.c.0.s8 %v1143
        %v1145 = vlaneseq
        %v1146 = vshrl.u32 %v1145, 7
        %v1147 = vsub.s32 %v1144, %v1146
        %v1148 = vrot.slane %v1134, %v1147
        %v1149 = vcombine.high %v1141, %v1141
        %v1150 = vcombine.high %v1148, %v1148
        %v1159 = vrot.slane %v1124, 7
        %v1160 = vrot.slane %v1159, 2
        %v1161 = vrot.slane %v1132, 7
        %v1162 = vrot.slane %v1161, 2
        %v1163 = vrot.slane %v1131, 7
        %v1164 = vrot.slane %v1163, 2
        %v1165 = vrot.slane %v1133, 7
        %v1166 = vrot.slane %v1165, 2
        %v1167 = vrot.slane %v1141, 7
        %v1168 = vrot.slane %v1167, 2
        %v1169 = vrot.slane %v1149, 7
        %v1170 = vrot.slane %v1169, 2
        %v1171 = vrot.slane %v1148, 7
        %v1172 = vrot.slane %v1171, 2
        %v1173 = vrot.slane %v1150, 7
        %v1174 = vrot.slane %v1173, 2
        %v1183 = vmax.f32 %v1124, %v1160
        %v1184 = vmax.f32 %v1132, %v1162
        %v1185 = vmax.f32 %v1131, %v1164
        %v1186 = vmax.f32 %v1133, %v1166
        %v1187 = vmax.f32 %v1141, %v1168
        %v1188 = vmax.f32 %v1149, %v1170
        %v1189 = vmax.f32 %v1148, %v1172
        %v1190 = vmax.f32 %v1150, %v1174
        %v1199 = vlaneseq
        %v1200 = vshrl.u32 %v1199, 7
        %v1201 = vsub.s32 0, %v1200
        %v1202 = vrot.slane %v1183, %v1201
        %v1203 = vlaneseq
        %v1204 = vshrl.u32 %v1203, 7
        %v1205 = vsub.s32 0, %v1204
        %v1206 = vrot.slane %v1184, %v1205
        %v1207 = vlaneseq
        %v1208 = vshrl.u32 %v1207, 7
        %v1209 = vsub.s32 0, %v1208
        %v1210 = vrot.slane %v1185, %v1209
        %v1211 = vlaneseq
        %v1212 = vshrl.u32 %v1211, 7
        %v1213 = vsub.s32 0, %v1212
        %v1214 = vrot.slane %v1186, %v1213
        %v1215 = vlaneseq
        %v1216 = vshrl.u32 %v1215, 7
        %v1217 = vsub.s32 0, %v1216
        %v1218 = vrot.slane %v1187, %v1217
        %v1219 = vlaneseq
        %v1220 = vshrl.u32 %v1219, 7
        %v1221 = vsub.s32 0, %v1220
        %v1222 = vrot.slane %v1188, %v1221
        %v1223 = vlaneseq
        %v1224 = vshrl.u32 %v1223, 7
        %v1225 = vsub.s32 0, %v1224
        %v1226 = vrot.slane %v1189, %v1225
        %v1227 = vlaneseq
        %v1228 = vshrl.u32 %v1227, 7
        %v1229 = vsub.s32 0, %v1228
        %v1230 = vrot.slane %v1190, %v1229
        %v1231 = vsel %vm432, %v1206, %v1202
        %v1232 = vsel %vm434, %v1210, %v1231
        %v1233 = vsel %vm436, %v1214, %v1232
        %v1234 = vsel %vm438, %v1218, %v1233
        %v1235 = vsel %vm440, %v1222, %v1234
        %v1236 = vsel %vm442, %v1226, %v1235
        %v1237 = vsel %vm444, %v1230, %v1236
        %1239 = vxpose.xlu0.b32.start [1/16] %v1237, 128
        %1240 = vxpose.xlu0.b32.cont [2/16] 0.0, 128
        %1241 = vxpose.xlu0.b32.cont [3/16] 0.0, 128
        %1242 = vxpose.xlu0.b32.cont [4/16] 0.0, 128
        %1243 = vxpose.xlu0.b32.cont [5/16] 0.0, 128
        %1244 = vxpose.xlu0.b32.cont [6/16] 0.0, 128
        %1245 = vxpose.xlu0.b32.cont [7/16] 0.0, 128
        %1246 = vxpose.xlu0.b32.cont [8/16] 0.0, 128
        %1247 = vxpose.xlu0.b32.cont [9/16] 0.0, 128
        %1248 = vxpose.xlu0.b32.cont [10/16] 0.0, 128
        %1249 = vxpose.xlu0.b32.cont [11/16] 0.0, 128
        %1250 = vxpose.xlu0.b32.cont [12/16] 0.0, 128
        %1251 = vxpose.xlu0.b32.cont [13/16] 0.0, 128
        %1252 = vxpose.xlu0.b32.cont [14/16] 0.0, 128
        %1253 = vxpose.xlu0.b32.cont [15/16] 0.0, 128
        %1254 = vxpose.xlu0.b32.end [16/16] 0.0, 128
        %v1255 = vpop.trf.xlu0
        %v1256 = vpop.trf.xlu0
        %v1257 = vpop.trf.xlu0
        %v1258 = vpop.trf.xlu0
        %v1259 = vpop.trf.xlu0
        %v1260 = vpop.trf.xlu0
        %v1261 = vpop.trf.xlu0
        %v1262 = vpop.trf.xlu0
        %v1263 = vpop.trf.xlu0
        %v1264 = vpop.trf.xlu0
        %v1265 = vpop.trf.xlu0
        %v1266 = vpop.trf.xlu0
        %v1267 = vpop.trf.xlu0
        %v1268 = vpop.trf.xlu0
        %v1269 = vpop.trf.xlu0
        %v1270 = vpop.trf.xlu0
        %v1273 = vcombine.high %v1255, %v1255
        %v1275 = vunpack.c.l.s4 1983009808
        %v1276 = vunpack.c.0.s8 %v1275
        %v1277 = vlaneseq
        %v1278 = vshrl.u32 %v1277, 7
        %v1279 = vsub.s32 %v1276, %v1278
        %v1280 = vrot.slane %v1255, %v1279
        %v1282 = vunpack.c.l.s4 1983009808
        %v1283 = vunpack.c.0.s8 %v1282
        %v1284 = vlaneseq
        %v1285 = vshrl.u32 %v1284, 7
        %v1286 = vsub.s32 %v1283, %v1285
        %v1287 = vrot.slane %v1273, %v1286
        %v1288 = vcombine.high %v1280, %v1280
        %v1289 = vcombine.high %v1287, %v1287
        %v1290 = vcombine.high %v1256, %v1256
        %v1292 = vunpack.c.l.s4 1983009808
        %v1293 = vunpack.c.0.s8 %v1292
        %v1294 = vlaneseq
        %v1295 = vshrl.u32 %v1294, 7
        %v1296 = vsub.s32 %v1293, %v1295
        %v1297 = vrot.slane %v1256, %v1296
        %v1299 = vunpack.c.l.s4 1983009808
        %v1300 = vunpack.c.0.s8 %v1299
        %v1301 = vlaneseq
        %v1302 = vshrl.u32 %v1301, 7
        %v1303 = vsub.s32 %v1300, %v1302
        %v1304 = vrot.slane %v1290, %v1303
        %v1305 = vcombine.high %v1297, %v1297
        %v1306 = vcombine.high %v1304, %v1304
        %v1315 = vrot.slane %v1280, 7
        %v1316 = vrot.slane %v1315, 2
        %v1317 = vrot.slane %v1288, 7
        %v1318 = vrot.slane %v1317, 2
        %v1319 = vrot.slane %v1287, 7
        %v1320 = vrot.slane %v1319, 2
        %v1321 = vrot.slane %v1289, 7
        %v1322 = vrot.slane %v1321, 2
        %v1323 = vrot.slane %v1297, 7
        %v1324 = vrot.slane %v1323, 2
        %v1325 = vrot.slane %v1305, 7
        %v1326 = vrot.slane %v1325, 2
        %v1327 = vrot.slane %v1304, 7
        %v1328 = vrot.slane %v1327, 2
        %v1329 = vrot.slane %v1306, 7
        %v1330 = vrot.slane %v1329, 2
        %v1339 = vmax.f32 %v1280, %v1316
        %v1340 = vmax.f32 %v1288, %v1318
        %v1341 = vmax.f32 %v1287, %v1320
        %v1342 = vmax.f32 %v1289, %v1322
        %v1343 = vmax.f32 %v1297, %v1324
        %v1344 = vmax.f32 %v1305, %v1326
        %v1345 = vmax.f32 %v1304, %v1328
        %v1346 = vmax.f32 %v1306, %v1330
        %s1347 = sld [smem:[#allocation7 + $0x4]]
        %v1348 = vstv %s1347
        %v1349 = vmul.f32 %v273, %v1348
        %v1350 = vmul.f32 %v274, %v1348
        %s1351 = sld [smem:[#allocation7 + $0x84]]
        %v1352 = vstv %s1351
        %v1353 = vmul.f32 %v276, %v1352
        %v1354 = vmul.f32 %v277, %v1352
        %v1355 = vadd.f32 %v1349, %v1353
        %v1356 = vadd.f32 %v1350, %v1354
        %s1357 = sld [smem:[#allocation7 + $0x104]]
        %v1358 = vstv %s1357
        %v1359 = vmul.f32 %v279, %v1358
        %v1360 = vmul.f32 %v280, %v1358
        %v1361 = vadd.f32 %v1355, %v1359
        %v1362 = vadd.f32 %v1356, %v1360
        %s1363 = sld [smem:[#allocation7 + $0x184]]
        %v1364 = vstv %s1363
        %v1365 = vmul.f32 %v282, %v1364
        %v1366 = vmul.f32 %v283, %v1364
        %v1367 = vadd.f32 %v1361, %v1365
        %v1368 = vadd.f32 %v1362, %v1366
        %s1369 = sld [smem:[#allocation8 + $0x4]]
        %v1370 = vstv %s1369
        %v1371 = vmul.f32 %v1367, %v1370
        %v1372 = vmul.f32 %v1368, %v1370
        %s1373 = sld [smem:[#allocation9 + $0x4]]
        %v1374 = vstv %s1373
        %v1375 = vadd.f32 %v1371, %v1374
        %v1376 = vadd.f32 %v1372, %v1374
        %v1377 = vmax.f32 %v1375, 0.0
        %v1378 = vmax.f32 %v1376, 0.0
        %v1381 = vcombine.high %v1377, %v1377
        %v1383 = vunpack.c.l.s4 1983009808
        %v1384 = vunpack.c.0.s8 %v1383
        %v1385 = vlaneseq
        %v1386 = vshrl.u32 %v1385, 7
        %v1387 = vsub.s32 %v1384, %v1386
        %v1388 = vrot.slane %v1377, %v1387
        %v1390 = vunpack.c.l.s4 1983009808
        %v1391 = vunpack.c.0.s8 %v1390
        %v1392 = vlaneseq
        %v1393 = vshrl.u32 %v1392, 7
        %v1394 = vsub.s32 %v1391, %v1393
        %v1395 = vrot.slane %v1381, %v1394
        %v1396 = vcombine.high %v1388, %v1388
        %v1397 = vcombine.high %v1395, %v1395
        %v1398 = vcombine.high %v1378, %v1378
        %v1400 = vunpack.c.l.s4 1983009808
        %v1401 = vunpack.c.0.s8 %v1400
        %v1402 = vlaneseq
        %v1403 = vshrl.u32 %v1402, 7
        %v1404 = vsub.s32 %v1401, %v1403
        %v1405 = vrot.slane %v1378, %v1404
        %v1407 = vunpack.c.l.s4 1983009808
        %v1408 = vunpack.c.0.s8 %v1407
        %v1409 = vlaneseq
        %v1410 = vshrl.u32 %v1409, 7
        %v1411 = vsub.s32 %v1408, %v1410
        %v1412 = vrot.slane %v1398, %v1411
        %v1413 = vcombine.high %v1405, %v1405
        %v1414 = vcombine.high %v1412, %v1412
        %v1423 = vrot.slane %v1388, 7
        %v1424 = vrot.slane %v1423, 2
        %v1425 = vrot.slane %v1396, 7
        %v1426 = vrot.slane %v1425, 2
        %v1427 = vrot.slane %v1395, 7
        %v1428 = vrot.slane %v1427, 2
        %v1429 = vrot.slane %v1397, 7
        %v1430 = vrot.slane %v1429, 2
        %v1431 = vrot.slane %v1405, 7
        %v1432 = vrot.slane %v1431, 2
        %v1433 = vrot.slane %v1413, 7
        %v1434 = vrot.slane %v1433, 2
        %v1435 = vrot.slane %v1412, 7
        %v1436 = vrot.slane %v1435, 2
        %v1437 = vrot.slane %v1414, 7
        %v1438 = vrot.slane %v1437, 2
        %v1447 = vmax.f32 %v1388, %v1424
        %v1448 = vmax.f32 %v1396, %v1426
        %v1449 = vmax.f32 %v1395, %v1428
        %v1450 = vmax.f32 %v1397, %v1430
        %v1451 = vmax.f32 %v1405, %v1432
        %v1452 = vmax.f32 %v1413, %v1434
        %v1453 = vmax.f32 %v1412, %v1436
        %v1454 = vmax.f32 %v1414, %v1438
        %v1463 = vlaneseq
        %v1464 = vshrl.u32 %v1463, 7
        %v1465 = vsub.s32 0, %v1464
        %v1466 = vrot.slane %v1447, %v1465
        %v1467 = vlaneseq
        %v1468 = vshrl.u32 %v1467, 7
        %v1469 = vsub.s32 0, %v1468
        %v1470 = vrot.slane %v1448, %v1469
        %v1471 = vlaneseq
        %v1472 = vshrl.u32 %v1471, 7
        %v1473 = vsub.s32 0, %v1472
        %v1474 = vrot.slane %v1449, %v1473
        %v1475 = vlaneseq
        %v1476 = vshrl.u32 %v1475, 7
        %v1477 = vsub.s32 0, %v1476
        %v1478 = vrot.slane %v1450, %v1477
        %v1479 = vlaneseq
        %v1480 = vshrl.u32 %v1479, 7
        %v1481 = vsub.s32 0, %v1480
        %v1482 = vrot.slane %v1451, %v1481
        %v1483 = vlaneseq
        %v1484 = vshrl.u32 %v1483, 7
        %v1485 = vsub.s32 0, %v1484
        %v1486 = vrot.slane %v1452, %v1485
        %v1487 = vlaneseq
        %v1488 = vshrl.u32 %v1487, 7
        %v1489 = vsub.s32 0, %v1488
        %v1490 = vrot.slane %v1453, %v1489
        %v1491 = vlaneseq
        %v1492 = vshrl.u32 %v1491, 7
        %v1493 = vsub.s32 0, %v1492
        %v1494 = vrot.slane %v1454, %v1493
        %v1495 = vsel %vm432, %v1470, %v1466
        %v1496 = vsel %vm434, %v1474, %v1495
        %v1497 = vsel %vm436, %v1478, %v1496
        %v1498 = vsel %vm438, %v1482, %v1497
        %v1499 = vsel %vm440, %v1486, %v1498
        %v1500 = vsel %vm442, %v1490, %v1499
        %v1501 = vsel %vm444, %v1494, %v1500
        %1503 = vxpose.xlu0.b32.start [1/16] %v1501, 128
        %1504 = vxpose.xlu0.b32.cont [2/16] 0.0, 128
        %1505 = vxpose.xlu0.b32.cont [3/16] 0.0, 128
        %1506 = vxpose.xlu0.b32.cont [4/16] 0.0, 128
        %1507 = vxpose.xlu0.b32.cont [5/16] 0.0, 128
        %1508 = vxpose.xlu0.b32.cont [6/16] 0.0, 128
        %1509 = vxpose.xlu0.b32.cont [7/16] 0.0, 128
        %1510 = vxpose.xlu0.b32.cont [8/16] 0.0, 128
        %1511 = vxpose.xlu0.b32.cont [9/16] 0.0, 128
        %1512 = vxpose.xlu0.b32.cont [10/16] 0.0, 128
        %1513 = vxpose.xlu0.b32.cont [11/16] 0.0, 128
        %1514 = vxpose.xlu0.b32.cont [12/16] 0.0, 128
        %1515 = vxpose.xlu0.b32.cont [13/16] 0.0, 128
        %1516 = vxpose.xlu0.b32.cont [14/16] 0.0, 128
        %1517 = vxpose.xlu0.b32.cont [15/16] 0.0, 128
        %1518 = vxpose.xlu0.b32.end [16/16] 0.0, 128
        %v1519 = vpop.trf.xlu0
        %v1520 = vpop.trf.xlu0
        %v1521 = vpop.trf.xlu0
        %v1522 = vpop.trf.xlu0
        %v1523 = vpop.trf.xlu0
        %v1524 = vpop.trf.xlu0
        %v1525 = vpop.trf.xlu0
        %v1526 = vpop.trf.xlu0
        %v1527 = vpop.trf.xlu0
        %v1528 = vpop.trf.xlu0
        %v1529 = vpop.trf.xlu0
        %v1530 = vpop.trf.xlu0
        %v1531 = vpop.trf.xlu0
        %v1532 = vpop.trf.xlu0
        %v1533 = vpop.trf.xlu0
        %v1534 = vpop.trf.xlu0
        %v1537 = vcombine.high %v1519, %v1519
        %v1539 = vunpack.c.l.s4 1983009808
        %v1540 = vunpack.c.0.s8 %v1539
        %v1541 = vlaneseq
        %v1542 = vshrl.u32 %v1541, 7
        %v1543 = vsub.s32 %v1540, %v1542
        %v1544 = vrot.slane %v1519, %v1543
        %v1546 = vunpack.c.l.s4 1983009808
        %v1547 = vunpack.c.0.s8 %v1546
        %v1548 = vlaneseq
        %v1549 = vshrl.u32 %v1548, 7
        %v1550 = vsub.s32 %v1547, %v1549
        %v1551 = vrot.slane %v1537, %v1550
        %v1552 = vcombine.high %v1544, %v1544
        %v1553 = vcombine.high %v1551, %v1551
        %v1554 = vcombine.high %v1520, %v1520
        %v1556 = vunpack.c.l.s4 1983009808
        %v1557 = vunpack.c.0.s8 %v1556
        %v1558 = vlaneseq
        %v1559 = vshrl.u32 %v1558, 7
        %v1560 = vsub.s32 %v1557, %v1559
        %v1561 = vrot.slane %v1520, %v1560
        %v1563 = vunpack.c.l.s4 1983009808
        %v1564 = vunpack.c.0.s8 %v1563
        %v1565 = vlaneseq
        %v1566 = vshrl.u32 %v1565, 7
        %v1567 = vsub.s32 %v1564, %v1566
        %v1568 = vrot.slane %v1554, %v1567
        %v1569 = vcombine.high %v1561, %v1561
        %v1570 = vcombine.high %v1568, %v1568
        %v1579 = vrot.slane %v1544, 7
        %v1580 = vrot.slane %v1579, 2
        %v1581 = vrot.slane %v1552, 7
        %v1582 = vrot.slane %v1581, 2
        %v1583 = vrot.slane %v1551, 7
        %v1584 = vrot.slane %v1583, 2
        %v1585 = vrot.slane %v1553, 7
        %v1586 = vrot.slane %v1585, 2
        %v1587 = vrot.slane %v1561, 7
        %v1588 = vrot.slane %v1587, 2
        %v1589 = vrot.slane %v1569, 7
        %v1590 = vrot.slane %v1589, 2
        %v1591 = vrot.slane %v1568, 7
        %v1592 = vrot.slane %v1591, 2
        %v1593 = vrot.slane %v1570, 7
        %v1594 = vrot.slane %v1593, 2
        %v1603 = vmax.f32 %v1544, %v1580
        %v1604 = vmax.f32 %v1552, %v1582
        %v1605 = vmax.f32 %v1551, %v1584
        %v1606 = vmax.f32 %v1553, %v1586
        %v1607 = vmax.f32 %v1561, %v1588
        %v1608 = vmax.f32 %v1569, %v1590
        %v1609 = vmax.f32 %v1568, %v1592
        %v1610 = vmax.f32 %v1570, %v1594
        %s1611 = sld [smem:[#allocation7 + $0x5]]
        %v1612 = vstv %s1611
        %v1613 = vmul.f32 %v273, %v1612
        %v1614 = vmul.f32 %v274, %v1612
        %s1615 = sld [smem:[#allocation7 + $0x85]]
        %v1616 = vstv %s1615
        %v1617 = vmul.f32 %v276, %v1616
        %v1618 = vmul.f32 %v277, %v1616
        %v1619 = vadd.f32 %v1613, %v1617
        %v1620 = vadd.f32 %v1614, %v1618
        %s1621 = sld [smem:[#allocation7 + $0x105]]
        %v1622 = vstv %s1621
        %v1623 = vmul.f32 %v279, %v1622
        %v1624 = vmul.f32 %v280, %v1622
        %v1625 = vadd.f32 %v1619, %v1623
        %v1626 = vadd.f32 %v1620, %v1624
        %s1627 = sld [smem:[#allocation7 + $0x185]]
        %v1628 = vstv %s1627
        %v1629 = vmul.f32 %v282, %v1628
        %v1630 = vmul.f32 %v283, %v1628
        %v1631 = vadd.f32 %v1625, %v1629
        %v1632 = vadd.f32 %v1626, %v1630
        %s1633 = sld [smem:[#allocation8 + $0x5]]
        %v1634 = vstv %s1633
        %v1635 = vmul.f32 %v1631, %v1634
        %v1636 = vmul.f32 %v1632, %v1634
        %s1637 = sld [smem:[#allocation9 + $0x5]]
        %v1638 = vstv %s1637
        %v1639 = vadd.f32 %v1635, %v1638
        %v1640 = vadd.f32 %v1636, %v1638
        %v1641 = vmax.f32 %v1639, 0.0
        %v1642 = vmax.f32 %v1640, 0.0
        %v1645 = vcombine.high %v1641, %v1641
        %v1647 = vunpack.c.l.s4 1983009808
        %v1648 = vunpack.c.0.s8 %v1647
        %v1649 = vlaneseq
        %v1650 = vshrl.u32 %v1649, 7
        %v1651 = vsub.s32 %v1648, %v1650
        %v1652 = vrot.slane %v1641, %v1651
        %v1654 = vunpack.c.l.s4 1983009808
        %v1655 = vunpack.c.0.s8 %v1654
        %v1656 = vlaneseq
        %v1657 = vshrl.u32 %v1656, 7
        %v1658 = vsub.s32 %v1655, %v1657
        %v1659 = vrot.slane %v1645, %v1658
        %v1660 = vcombine.high %v1652, %v1652
        %v1661 = vcombine.high %v1659, %v1659
        %v1662 = vcombine.high %v1642, %v1642
        %v1664 = vunpack.c.l.s4 1983009808
        %v1665 = vunpack.c.0.s8 %v1664
        %v1666 = vlaneseq
        %v1667 = vshrl.u32 %v1666, 7
        %v1668 = vsub.s32 %v1665, %v1667
        %v1669 = vrot.slane %v1642, %v1668
        %v1671 = vunpack.c.l.s4 1983009808
        %v1672 = vunpack.c.0.s8 %v1671
        %v1673 = vlaneseq
        %v1674 = vshrl.u32 %v1673, 7
        %v1675 = vsub.s32 %v1672, %v1674
        %v1676 = vrot.slane %v1662, %v1675
        %v1677 = vcombine.high %v1669, %v1669
        %v1678 = vcombine.high %v1676, %v1676
        %v1687 = vrot.slane %v1652, 7
        %v1688 = vrot.slane %v1687, 2
        %v1689 = vrot.slane %v1660, 7
        %v1690 = vrot.slane %v1689, 2
        %v1691 = vrot.slane %v1659, 7
        %v1692 = vrot.slane %v1691, 2
        %v1693 = vrot.slane %v1661, 7
        %v1694 = vrot.slane %v1693, 2
        %v1695 = vrot.slane %v1669, 7
        %v1696 = vrot.slane %v1695, 2
        %v1697 = vrot.slane %v1677, 7
        %v1698 = vrot.slane %v1697, 2
        %v1699 = vrot.slane %v1676, 7
        %v1700 = vrot.slane %v1699, 2
        %v1701 = vrot.slane %v1678, 7
        %v1702 = vrot.slane %v1701, 2
        %v1711 = vmax.f32 %v1652, %v1688
        %v1712 = vmax.f32 %v1660, %v1690
        %v1713 = vmax.f32 %v1659, %v1692
        %v1714 = vmax.f32 %v1661, %v1694
        %v1715 = vmax.f32 %v1669, %v1696
        %v1716 = vmax.f32 %v1677, %v1698
        %v1717 = vmax.f32 %v1676, %v1700
        %v1718 = vmax.f32 %v1678, %v1702
        %v1727 = vlaneseq
        %v1728 = vshrl.u32 %v1727, 7
        %v1729 = vsub.s32 0, %v1728
        %v1730 = vrot.slane %v1711, %v1729
        %v1731 = vlaneseq
        %v1732 = vshrl.u32 %v1731, 7
        %v1733 = vsub.s32 0, %v1732
        %v1734 = vrot.slane %v1712, %v1733
        %v1735 = vlaneseq
        %v1736 = vshrl.u32 %v1735, 7
        %v1737 = vsub.s32 0, %v1736
        %v1738 = vrot.slane %v1713, %v1737
        %v1739 = vlaneseq
        %v1740 = vshrl.u32 %v1739, 7
        %v1741 = vsub.s32 0, %v1740
        %v1742 = vrot.slane %v1714, %v1741
        %v1743 = vlaneseq
        %v1744 = vshrl.u32 %v1743, 7
        %v1745 = vsub.s32 0, %v1744
        %v1746 = vrot.slane %v1715, %v1745
        %v1747 = vlaneseq
        %v1748 = vshrl.u32 %v1747, 7
        %v1749 = vsub.s32 0, %v1748
        %v1750 = vrot.slane %v1716, %v1749
        %v1751 = vlaneseq
        %v1752 = vshrl.u32 %v1751, 7
        %v1753 = vsub.s32 0, %v1752
        %v1754 = vrot.slane %v1717, %v1753
        %v1755 = vlaneseq
        %v1756 = vshrl.u32 %v1755, 7
        %v1757 = vsub.s32 0, %v1756
        %v1758 = vrot.slane %v1718, %v1757
        %v1759 = vsel %vm432, %v1734, %v1730
        %v1760 = vsel %vm434, %v1738, %v1759
        %v1761 = vsel %vm436, %v1742, %v1760
        %v1762 = vsel %vm438, %v1746, %v1761
        %v1763 = vsel %vm440, %v1750, %v1762
        %v1764 = vsel %vm442, %v1754, %v1763
        %v1765 = vsel %vm444, %v1758, %v1764
        %1767 = vxpose.xlu0.b32.start [1/16] %v1765, 128
        %1768 = vxpose.xlu0.b32.cont [2/16] 0.0, 128
        %1769 = vxpose.xlu0.b32.cont [3/16] 0.0, 128
        %1770 = vxpose.xlu0.b32.cont [4/16] 0.0, 128
        %1771 = vxpose.xlu0.b32.cont [5/16] 0.0, 128
        %1772 = vxpose.xlu0.b32.cont [6/16] 0.0, 128
        %1773 = vxpose.xlu0.b32.cont [7/16] 0.0, 128
        %1774 = vxpose.xlu0.b32.cont [8/16] 0.0, 128
        %1775 = vxpose.xlu0.b32.cont [9/16] 0.0, 128
        %1776 = vxpose.xlu0.b32.cont [10/16] 0.0, 128
        %1777 = vxpose.xlu0.b32.cont [11/16] 0.0, 128
        %1778 = vxpose.xlu0.b32.cont [12/16] 0.0, 128
        %1779 = vxpose.xlu0.b32.cont [13/16] 0.0, 128
        %1780 = vxpose.xlu0.b32.cont [14/16] 0.0, 128
        %1781 = vxpose.xlu0.b32.cont [15/16] 0.0, 128
        %1782 = vxpose.xlu0.b32.end [16/16] 0.0, 128
        %v1783 = vpop.trf.xlu0
        %v1784 = vpop.trf.xlu0
        %v1785 = vpop.trf.xlu0
        %v1786 = vpop.trf.xlu0
        %v1787 = vpop.trf.xlu0
        %v1788 = vpop.trf.xlu0
        %v1789 = vpop.trf.xlu0
        %v1790 = vpop.trf.xlu0
        %v1791 = vpop.trf.xlu0
        %v1792 = vpop.trf.xlu0
        %v1793 = vpop.trf.xlu0
        %v1794 = vpop.trf.xlu0
        %v1795 = vpop.trf.xlu0
        %v1796 = vpop.trf.xlu0
        %v1797 = vpop.trf.xlu0
        %v1798 = vpop.trf.xlu0
        %v1801 = vcombine.high %v1783, %v1783
        %v1803 = vunpack.c.l.s4 1983009808
        %v1804 = vunpack.c.0.s8 %v1803
        %v1805 = vlaneseq
        %v1806 = vshrl.u32 %v1805, 7
        %v1807 = vsub.s32 %v1804, %v1806
        %v1808 = vrot.slane %v1783, %v1807
        %v1810 = vunpack.c.l.s4 1983009808
        %v1811 = vunpack.c.0.s8 %v1810
        %v1812 = vlaneseq
        %v1813 = vshrl.u32 %v1812, 7
        %v1814 = vsub.s32 %v1811, %v1813
        %v1815 = vrot.slane %v1801, %v1814
        %v1816 = vcombine.high %v1808, %v1808
        %v1817 = vcombine.high %v1815, %v1815
        %v1818 = vcombine.high %v1784, %v1784
        %v1820 = vunpack.c.l.s4 1983009808
        %v1821 = vunpack.c.0.s8 %v1820
        %v1822 = vlaneseq
        %v1823 = vshrl.u32 %v1822, 7
        %v1824 = vsub.s32 %v1821, %v1823
        %v1825 = vrot.slane %v1784, %v1824
        %v1827 = vunpack.c.l.s4 1983009808
        %v1828 = vunpack.c.0.s8 %v1827
        %v1829 = vlaneseq
        %v1830 = vshrl.u32 %v1829, 7
        %v1831 = vsub.s32 %v1828, %v1830
        %v1832 = vrot.slane %v1818, %v1831
        %v1833 = vcombine.high %v1825, %v1825
        %v1834 = vcombine.high %v1832, %v1832
        %v1843 = vrot.slane %v1808, 7
        %v1844 = vrot.slane %v1843, 2
        %v1845 = vrot.slane %v1816, 7
        %v1846 = vrot.slane %v1845, 2
        %v1847 = vrot.slane %v1815, 7
        %v1848 = vrot.slane %v1847, 2
        %v1849 = vrot.slane %v1817, 7
        %v1850 = vrot.slane %v1849, 2
        %v1851 = vrot.slane %v1825, 7
        %v1852 = vrot.slane %v1851, 2
        %v1853 = vrot.slane %v1833, 7
        %v1854 = vrot.slane %v1853, 2
        %v1855 = vrot.slane %v1832, 7
        %v1856 = vrot.slane %v1855, 2
        %v1857 = vrot.slane %v1834, 7
        %v1858 = vrot.slane %v1857, 2
        %v1867 = vmax.f32 %v1808, %v1844
        %v1868 = vmax.f32 %v1816, %v1846
        %v1869 = vmax.f32 %v1815, %v1848
        %v1870 = vmax.f32 %v1817, %v1850
        %v1871 = vmax.f32 %v1825, %v1852
        %v1872 = vmax.f32 %v1833, %v1854
        %v1873 = vmax.f32 %v1832, %v1856
        %v1874 = vmax.f32 %v1834, %v1858
        %s1875 = sld [smem:[#allocation7 + $0x6]]
        %v1876 = vstv %s1875
        %v1877 = vmul.f32 %v273, %v1876
        %v1878 = vmul.f32 %v274, %v1876
        %s1879 = sld [smem:[#allocation7 + $0x86]]
        %v1880 = vstv %s1879
        %v1881 = vmul.f32 %v276, %v1880
        %v1882 = vmul.f32 %v277, %v1880
        %v1883 = vadd.f32 %v1877, %v1881
        %v1884 = vadd.f32 %v1878, %v1882
        %s1885 = sld [smem:[#allocation7 + $0x106]]
        %v1886 = vstv %s1885
        %v1887 = vmul.f32 %v279, %v1886
        %v1888 = vmul.f32 %v280, %v1886
        %v1889 = vadd.f32 %v1883, %v1887
        %v1890 = vadd.f32 %v1884, %v1888
        %s1891 = sld [smem:[#allocation7 + $0x186]]
        %v1892 = vstv %s1891
        %v1893 = vmul.f32 %v282, %v1892
        %v1894 = vmul.f32 %v283, %v1892
        %v1895 = vadd.f32 %v1889, %v1893
        %v1896 = vadd.f32 %v1890, %v1894
        %s1897 = sld [smem:[#allocation8 + $0x6]]
        %v1898 = vstv %s1897
        %v1899 = vmul.f32 %v1895, %v1898
        %v1900 = vmul.f32 %v1896, %v1898
        %s1901 = sld [smem:[#allocation9 + $0x6]]
        %v1902 = vstv %s1901
        %v1903 = vadd.f32 %v1899, %v1902
        %v1904 = vadd.f32 %v1900, %v1902
        %v1905 = vmax.f32 %v1903, 0.0
        %v1906 = vmax.f32 %v1904, 0.0
        %v1909 = vcombine.high %v1905, %v1905
        %v1911 = vunpack.c.l.s4 1983009808
        %v1912 = vunpack.c.0.s8 %v1911
        %v1913 = vlaneseq
        %v1914 = vshrl.u32 %v1913, 7
        %v1915 = vsub.s32 %v1912, %v1914
        %v1916 = vrot.slane %v1905, %v1915
        %v1918 = vunpack.c.l.s4 1983009808
        %v1919 = vunpack.c.0.s8 %v1918
        %v1920 = vlaneseq
        %v1921 = vshrl.u32 %v1920, 7
        %v1922 = vsub.s32 %v1919, %v1921
        %v1923 = vrot.slane %v1909, %v1922
        %v1924 = vcombine.high %v1916, %v1916
        %v1925 = vcombine.high %v1923, %v1923
        %v1926 = vcombine.high %v1906, %v1906
        %v1928 = vunpack.c.l.s4 1983009808
        %v1929 = vunpack.c.0.s8 %v1928
        %v1930 = vlaneseq
        %v1931 = vshrl.u32 %v1930, 7
        %v1932 = vsub.s32 %v1929, %v1931
        %v1933 = vrot.slane %v1906, %v1932
        %v1935 = vunpack.c.l.s4 1983009808
        %v1936 = vunpack.c.0.s8 %v1935
        %v1937 = vlaneseq
        %v1938 = vshrl.u32 %v1937, 7
        %v1939 = vsub.s32 %v1936, %v1938
        %v1940 = vrot.slane %v1926, %v1939
        %v1941 = vcombine.high %v1933, %v1933
        %v1942 = vcombine.high %v1940, %v1940
        %v1951 = vrot.slane %v1916, 7
        %v1952 = vrot.slane %v1951, 2
        %v1953 = vrot.slane %v1924, 7
        %v1954 = vrot.slane %v1953, 2
        %v1955 = vrot.slane %v1923, 7
        %v1956 = vrot.slane %v1955, 2
        %v1957 = vrot.slane %v1925, 7
        %v1958 = vrot.slane %v1957, 2
        %v1959 = vrot.slane %v1933, 7
        %v1960 = vrot.slane %v1959, 2
        %v1961 = vrot.slane %v1941, 7
        %v1962 = vrot.slane %v1961, 2
        %v1963 = vrot.slane %v1940, 7
        %v1964 = vrot.slane %v1963, 2
        %v1965 = vrot.slane %v1942, 7
        %v1966 = vrot.slane %v1965, 2
        %v1975 = vmax.f32 %v1916, %v1952
        %v1976 = vmax.f32 %v1924, %v1954
        %v1977 = vmax.f32 %v1923, %v1956
        %v1978 = vmax.f32 %v1925, %v1958
        %v1979 = vmax.f32 %v1933, %v1960
        %v1980 = vmax.f32 %v1941, %v1962
        %v1981 = vmax.f32 %v1940, %v1964
        %v1982 = vmax.f32 %v1942, %v1966
        %v1991 = vlaneseq
        %v1992 = vshrl.u32 %v1991, 7
        %v1993 = vsub.s32 0, %v1992
        %v1994 = vrot.slane %v1975, %v1993
        %v1995 = vlaneseq
        %v1996 = vshrl.u32 %v1995, 7
        %v1997 = vsub.s32 0, %v1996
        %v1998 = vrot.slane %v1976, %v1997
        %v1999 = vlaneseq
        %v2000 = vshrl.u32 %v1999, 7
        %v2001 = vsub.s32 0, %v2000
        %v2002 = vrot.slane %v1977, %v2001
        %v2003 = vlaneseq
        %v2004 = vshrl.u32 %v2003, 7
        %v2005 = vsub.s32 0, %v2004
        %v2006 = vrot.slane %v1978, %v2005
        %v2007 = vlaneseq
        %v2008 = vshrl.u32 %v2007, 7
        %v2009 = vsub.s32 0, %v2008
        %v2010 = vrot.slane %v1979, %v2009
        %v2011 = vlaneseq
        %v2012 = vshrl.u32 %v2011, 7
        %v2013 = vsub.s32 0, %v2012
        %v2014 = vrot.slane %v1980, %v2013
        %v2015 = vlaneseq
        %v2016 = vshrl.u32 %v2015, 7
        %v2017 = vsub.s32 0, %v2016
        %v2018 = vrot.slane %v1981, %v2017
        %v2019 = vlaneseq
        %v2020 = vshrl.u32 %v2019, 7
        %v2021 = vsub.s32 0, %v2020
        %v2022 = vrot.slane %v1982, %v2021
        %v2023 = vsel %vm432, %v1998, %v1994
        %v2024 = vsel %vm434, %v2002, %v2023
        %v2025 = vsel %vm436, %v2006, %v2024
        %v2026 = vsel %vm438, %v2010, %v2025
        %v2027 = vsel %vm440, %v2014, %v2026
        %v2028 = vsel %vm442, %v2018, %v2027
        %v2029 = vsel %vm444, %v2022, %v2028
        %2031 = vxpose.xlu0.b32.start [1/16] %v2029, 128
        %2032 = vxpose.xlu0.b32.cont [2/16] 0.0, 128
        %2033 = vxpose.xlu0.b32.cont [3/16] 0.0, 128
        %2034 = vxpose.xlu0.b32.cont [4/16] 0.0, 128
        %2035 = vxpose.xlu0.b32.cont [5/16] 0.0, 128
        %2036 = vxpose.xlu0.b32.cont [6/16] 0.0, 128
        %2037 = vxpose.xlu0.b32.cont [7/16] 0.0, 128
        %2038 = vxpose.xlu0.b32.cont [8/16] 0.0, 128
        %2039 = vxpose.xlu0.b32.cont [9/16] 0.0, 128
        %2040 = vxpose.xlu0.b32.cont [10/16] 0.0, 128
        %2041 = vxpose.xlu0.b32.cont [11/16] 0.0, 128
        %2042 = vxpose.xlu0.b32.cont [12/16] 0.0, 128
        %2043 = vxpose.xlu0.b32.cont [13/16] 0.0, 128
        %2044 = vxpose.xlu0.b32.cont [14/16] 0.0, 128
        %2045 = vxpose.xlu0.b32.cont [15/16] 0.0, 128
        %2046 = vxpose.xlu0.b32.end [16/16] 0.0, 128
        %v2047 = vpop.trf.xlu0
        %v2048 = vpop.trf.xlu0
        %v2049 = vpop.trf.xlu0
        %v2050 = vpop.trf.xlu0
        %v2051 = vpop.trf.xlu0
        %v2052 = vpop.trf.xlu0
        %v2053 = vpop.trf.xlu0
        %v2054 = vpop.trf.xlu0
        %v2055 = vpop.trf.xlu0
        %v2056 = vpop.trf.xlu0
        %v2057 = vpop.trf.xlu0
        %v2058 = vpop.trf.xlu0
        %v2059 = vpop.trf.xlu0
        %v2060 = vpop.trf.xlu0
        %v2061 = vpop.trf.xlu0
        %v2062 = vpop.trf.xlu0
        %v2065 = vcombine.high %v2047, %v2047
        %v2067 = vunpack.c.l.s4 1983009808
        %v2068 = vunpack.c.0.s8 %v2067
        %v2069 = vlaneseq
        %v2070 = vshrl.u32 %v2069, 7
        %v2071 = vsub.s32 %v2068, %v2070
        %v2072 = vrot.slane %v2047, %v2071
        %v2074 = vunpack.c.l.s4 1983009808
        %v2075 = vunpack.c.0.s8 %v2074
        %v2076 = vlaneseq
        %v2077 = vshrl.u32 %v2076, 7
        %v2078 = vsub.s32 %v2075, %v2077
        %v2079 = vrot.slane %v2065, %v2078
        %v2080 = vcombine.high %v2072, %v2072
        %v2081 = vcombine.high %v2079, %v2079
        %v2082 = vcombine.high %v2048, %v2048
        %v2084 = vunpack.c.l.s4 1983009808
        %v2085 = vunpack.c.0.s8 %v2084
        %v2086 = vlaneseq
        %v2087 = vshrl.u32 %v2086, 7
        %v2088 = vsub.s32 %v2085, %v2087
        %v2089 = vrot.slane %v2048, %v2088
        %v2091 = vunpack.c.l.s4 1983009808
        %v2092 = vunpack.c.0.s8 %v2091
        %v2093 = vlaneseq
        %v2094 = vshrl.u32 %v2093, 7
        %v2095 = vsub.s32 %v2092, %v2094
        %v2096 = vrot.slane %v2082, %v2095
        %v2097 = vcombine.high %v2089, %v2089
        %v2098 = vcombine.high %v2096, %v2096
        %v2107 = vrot.slane %v2072, 7
        %v2108 = vrot.slane %v2107, 2
        %v2109 = vrot.slane %v2080, 7
        %v2110 = vrot.slane %v2109, 2
        %v2111 = vrot.slane %v2079, 7
        %v2112 = vrot.slane %v2111, 2
        %v2113 = vrot.slane %v2081, 7
        %v2114 = vrot.slane %v2113, 2
        %v2115 = vrot.slane %v2089, 7
        %v2116 = vrot.slane %v2115, 2
        %v2117 = vrot.slane %v2097, 7
        %v2118 = vrot.slane %v2117, 2
        %v2119 = vrot.slane %v2096, 7
        %v2120 = vrot.slane %v2119, 2
        %v2121 = vrot.slane %v2098, 7
        %v2122 = vrot.slane %v2121, 2
        %v2131 = vmax.f32 %v2072, %v2108
        %v2132 = vmax.f32 %v2080, %v2110
        %v2133 = vmax.f32 %v2079, %v2112
        %v2134 = vmax.f32 %v2081, %v2114
        %v2135 = vmax.f32 %v2089, %v2116
        %v2136 = vmax.f32 %v2097, %v2118
        %v2137 = vmax.f32 %v2096, %v2120
        %v2138 = vmax.f32 %v2098, %v2122
        %s2139 = sld [smem:[#allocation7 + $0x7]]
        %v2140 = vstv %s2139
        %v2141 = vmul.f32 %v273, %v2140
        %v2142 = vmul.f32 %v274, %v2140
        %s2143 = sld [smem:[#allocation7 + $0x87]]
        %v2144 = vstv %s2143
        %v2145 = vmul.f32 %v276, %v2144
        %v2146 = vmul.f32 %v277, %v2144
        %v2147 = vadd.f32 %v2141, %v2145
        %v2148 = vadd.f32 %v2142, %v2146
        %s2149 = sld [smem:[#allocation7 + $0x107]]
        %v2150 = vstv %s2149
        %v2151 = vmul.f32 %v279, %v2150
        %v2152 = vmul.f32 %v280, %v2150
        %v2153 = vadd.f32 %v2147, %v2151
        %v2154 = vadd.f32 %v2148, %v2152
        %s2155 = sld [smem:[#allocation7 + $0x187]]
        %v2156 = vstv %s2155
        %v2157 = vmul.f32 %v282, %v2156
        %v2158 = vmul.f32 %v283, %v2156
        %v2159 = vadd.f32 %v2153, %v2157
        %v2160 = vadd.f32 %v2154, %v2158
        %s2161 = sld [smem:[#allocation8 + $0x7]]
        %v2162 = vstv %s2161
        %v2163 = vmul.f32 %v2159, %v2162
        %v2164 = vmul.f32 %v2160, %v2162
        %s2165 = sld [smem:[#allocation9 + $0x7]]
        %v2166 = vstv %s2165
        %v2167 = vadd.f32 %v2163, %v2166
        %v2168 = vadd.f32 %v2164, %v2166
        %v2169 = vmax.f32 %v2167, 0.0
        %v2170 = vmax.f32 %v2168, 0.0
        %v2173 = vcombine.high %v2169, %v2169
        %v2175 = vunpack.c.l.s4 1983009808
        %v2176 = vunpack.c.0.s8 %v2175
        %v2177 = vlaneseq
        %v2178 = vshrl.u32 %v2177, 7
        %v2179 = vsub.s32 %v2176, %v2178
        %v2180 = vrot.slane %v2169, %v2179
        %v2182 = vunpack.c.l.s4 1983009808
        %v2183 = vunpack.c.0.s8 %v2182
        %v2184 = vlaneseq
        %v2185 = vshrl.u32 %v2184, 7
        %v2186 = vsub.s32 %v2183, %v2185
        %v2187 = vrot.slane %v2173, %v2186
        %v2188 = vcombine.high %v2180, %v2180
        %v2189 = vcombine.high %v2187, %v2187
        %v2190 = vcombine.high %v2170, %v2170
        %v2192 = vunpack.c.l.s4 1983009808
        %v2193 = vunpack.c.0.s8 %v2192
        %v2194 = vlaneseq
        %v2195 = vshrl.u32 %v2194, 7
        %v2196 = vsub.s32 %v2193, %v2195
        %v2197 = vrot.slane %v2170, %v2196
        %v2199 = vunpack.c.l.s4 1983009808
        %v2200 = vunpack.c.0.s8 %v2199
        %v2201 = vlaneseq
        %v2202 = vshrl.u32 %v2201, 7
        %v2203 = vsub.s32 %v2200, %v2202
        %v2204 = vrot.slane %v2190, %v2203
        %v2205 = vcombine.high %v2197, %v2197
        %v2206 = vcombine.high %v2204, %v2204
        %v2215 = vrot.slane %v2180, 7
        %v2216 = vrot.slane %v2215, 2
        %v2217 = vrot.slane %v2188, 7
        %v2218 = vrot.slane %v2217, 2
        %v2219 = vrot.slane %v2187, 7
        %v2220 = vrot.slane %v2219, 2
        %v2221 = vrot.slane %v2189, 7
        %v2222 = vrot.slane %v2221, 2
        %v2223 = vrot.slane %v2197, 7
        %v2224 = vrot.slane %v2223, 2
        %v2225 = vrot.slane %v2205, 7
        %v2226 = vrot.slane %v2225, 2
        %v2227 = vrot.slane %v2204, 7
        %v2228 = vrot.slane %v2227, 2
        %v2229 = vrot.slane %v2206, 7
        %v2230 = vrot.slane %v2229, 2
        %v2239 = vmax.f32 %v2180, %v2216
        %v2240 = vmax.f32 %v2188, %v2218
        %v2241 = vmax.f32 %v2187, %v2220
        %v2242 = vmax.f32 %v2189, %v2222
        %v2243 = vmax.f32 %v2197, %v2224
        %v2244 = vmax.f32 %v2205, %v2226
        %v2245 = vmax.f32 %v2204, %v2228
        %v2246 = vmax.f32 %v2206, %v2230
        %v2255 = vlaneseq
        %v2256 = vshrl.u32 %v2255, 7
        %v2257 = vsub.s32 0, %v2256
        %v2258 = vrot.slane %v2239, %v2257
        %v2259 = vlaneseq
        %v2260 = vshrl.u32 %v2259, 7
        %v2261 = vsub.s32 0, %v2260
        %v2262 = vrot.slane %v2240, %v2261
        %v2263 = vlaneseq
        %v2264 = vshrl.u32 %v2263, 7
        %v2265 = vsub.s32 0, %v2264
        %v2266 = vrot.slane %v2241, %v2265
        %v2267 = vlaneseq
        %v2268 = vshrl.u32 %v2267, 7
        %v2269 = vsub.s32 0, %v2268
        %v2270 = vrot.slane %v2242, %v2269
        %v2271 = vlaneseq
        %v2272 = vshrl.u32 %v2271, 7
        %v2273 = vsub.s32 0, %v2272
        %v2274 = vrot.slane %v2243, %v2273
        %v2275 = vlaneseq
        %v2276 = vshrl.u32 %v2275, 7
        %v2277 = vsub.s32 0, %v2276
        %v2278 = vrot.slane %v2244, %v2277
        %v2279 = vlaneseq
        %v2280 = vshrl.u32 %v2279, 7
        %v2281 = vsub.s32 0, %v2280
        %v2282 = vrot.slane %v2245, %v2281
        %v2283 = vlaneseq
        %v2284 = vshrl.u32 %v2283, 7
        %v2285 = vsub.s32 0, %v2284
        %v2286 = vrot.slane %v2246, %v2285
        %v2287 = vsel %vm432, %v2262, %v2258
        %v2288 = vsel %vm434, %v2266, %v2287
        %v2289 = vsel %vm436, %v2270, %v2288
        %v2290 = vsel %vm438, %v2274, %v2289
        %v2291 = vsel %vm440, %v2278, %v2290
        %v2292 = vsel %vm442, %v2282, %v2291
        %v2293 = vsel %vm444, %v2286, %v2292
        %2295 = vxpose.xlu0.b32.start [1/16] %v2293, 128
        %2296 = vxpose.xlu0.b32.cont [2/16] 0.0, 128
        %2297 = vxpose.xlu0.b32.cont [3/16] 0.0, 128
        %2298 = vxpose.xlu0.b32.cont [4/16] 0.0, 128
        %2299 = vxpose.xlu0.b32.cont [5/16] 0.0, 128
        %2300 = vxpose.xlu0.b32.cont [6/16] 0.0, 128
        %2301 = vxpose.xlu0.b32.cont [7/16] 0.0, 128
        %2302 = vxpose.xlu0.b32.cont [8/16] 0.0, 128
        %2303 = vxpose.xlu0.b32.cont [9/16] 0.0, 128
        %2304 = vxpose.xlu0.b32.cont [10/16] 0.0, 128
        %2305 = vxpose.xlu0.b32.cont [11/16] 0.0, 128
        %2306 = vxpose.xlu0.b32.cont [12/16] 0.0, 128
        %2307 = vxpose.xlu0.b32.cont [13/16] 0.0, 128
        %2308 = vxpose.xlu0.b32.cont [14/16] 0.0, 128
        %2309 = vxpose.xlu0.b32.cont [15/16] 0.0, 128
        %2310 = vxpose.xlu0.b32.end [16/16] 0.0, 128
        %v2311 = vpop.trf.xlu0
        %v2312 = vpop.trf.xlu0
        %v2313 = vpop.trf.xlu0
        %v2314 = vpop.trf.xlu0
        %v2315 = vpop.trf.xlu0
        %v2316 = vpop.trf.xlu0
        %v2317 = vpop.trf.xlu0
        %v2318 = vpop.trf.xlu0
        %v2319 = vpop.trf.xlu0
        %v2320 = vpop.trf.xlu0
        %v2321 = vpop.trf.xlu0
        %v2322 = vpop.trf.xlu0
        %v2323 = vpop.trf.xlu0
        %v2324 = vpop.trf.xlu0
        %v2325 = vpop.trf.xlu0
        %v2326 = vpop.trf.xlu0
        %v2329 = vcombine.high %v2311, %v2311
        %v2331 = vunpack.c.l.s4 1983009808
        %v2332 = vunpack.c.0.s8 %v2331
        %v2333 = vlaneseq
        %v2334 = vshrl.u32 %v2333, 7
        %v2335 = vsub.s32 %v2332, %v2334
        %v2336 = vrot.slane %v2311, %v2335
        %v2338 = vunpack.c.l.s4 1983009808
        %v2339 = vunpack.c.0.s8 %v2338
        %v2340 = vlaneseq
        %v2341 = vshrl.u32 %v2340, 7
        %v2342 = vsub.s32 %v2339, %v2341
        %v2343 = vrot.slane %v2329, %v2342
        %v2344 = vcombine.high %v2336, %v2336
        %v2345 = vcombine.high %v2343, %v2343
        %v2346 = vcombine.high %v2312, %v2312
        %v2348 = vunpack.c.l.s4 1983009808
        %v2349 = vunpack.c.0.s8 %v2348
        %v2350 = vlaneseq
        %v2351 = vshrl.u32 %v2350, 7
        %v2352 = vsub.s32 %v2349, %v2351
        %v2353 = vrot.slane %v2312, %v2352
        %v2355 = vunpack.c.l.s4 1983009808
        %v2356 = vunpack.c.0.s8 %v2355
        %v2357 = vlaneseq
        %v2358 = vshrl.u32 %v2357, 7
        %v2359 = vsub.s32 %v2356, %v2358
        %v2360 = vrot.slane %v2346, %v2359
        %v2361 = vcombine.high %v2353, %v2353
        %v2362 = vcombine.high %v2360, %v2360
        %v2371 = vrot.slane %v2336, 7
        %v2372 = vrot.slane %v2371, 2
        %v2373 = vrot.slane %v2344, 7
        %v2374 = vrot.slane %v2373, 2
        %v2375 = vrot.slane %v2343, 7
        %v2376 = vrot.slane %v2375, 2
        %v2377 = vrot.slane %v2345, 7
        %v2378 = vrot.slane %v2377, 2
        %v2379 = vrot.slane %v2353, 7
        %v2380 = vrot.slane %v2379, 2
        %v2381 = vrot.slane %v2361, 7
        %v2382 = vrot.slane %v2381, 2
        %v2383 = vrot.slane %v2360, 7
        %v2384 = vrot.slane %v2383, 2
        %v2385 = vrot.slane %v2362, 7
        %v2386 = vrot.slane %v2385, 2
        %v2395 = vmax.f32 %v2336, %v2372
        %v2396 = vmax.f32 %v2344, %v2374
        %v2397 = vmax.f32 %v2343, %v2376
        %v2398 = vmax.f32 %v2345, %v2378
        %v2399 = vmax.f32 %v2353, %v2380
        %v2400 = vmax.f32 %v2361, %v2382
        %v2401 = vmax.f32 %v2360, %v2384
        %v2402 = vmax.f32 %v2362, %v2386
        %v2411 = vlaneseq
        %v2412 = vshrl.u32 %v2411, 7
        %v2413 = vsub.s32 0, %v2412
        %v2414 = vrot.slane %v547, %v2413
        %v2415 = vlaneseq
        %v2416 = vshrl.u32 %v2415, 7
        %v2417 = vsub.s32 0, %v2416
        %v2418 = vrot.slane %v548, %v2417
        %v2419 = vlaneseq
        %v2420 = vshrl.u32 %v2419, 7
        %v2421 = vsub.s32 0, %v2420
        %v2422 = vrot.slane %v549, %v2421
        %v2423 = vlaneseq
        %v2424 = vshrl.u32 %v2423, 7
        %v2425 = vsub.s32 0, %v2424
        %v2426 = vrot.slane %v550, %v2425
        %v2427 = vlaneseq
        %v2428 = vshrl.u32 %v2427, 7
        %v2429 = vsub.s32 0, %v2428
        %v2430 = vrot.slane %v551, %v2429
        %v2431 = vlaneseq
        %v2432 = vshrl.u32 %v2431, 7
        %v2433 = vsub.s32 0, %v2432
        %v2434 = vrot.slane %v552, %v2433
        %v2435 = vlaneseq
        %v2436 = vshrl.u32 %v2435, 7
        %v2437 = vsub.s32 0, %v2436
        %v2438 = vrot.slane %v553, %v2437
        %v2439 = vlaneseq
        %v2440 = vshrl.u32 %v2439, 7
        %v2441 = vsub.s32 0, %v2440
        %v2442 = vrot.slane %v554, %v2441
        %v2443 = vsel %vm432, %v2418, %v2414
        %v2444 = vsel %vm434, %v2422, %v2443
        %v2445 = vsel %vm436, %v2426, %v2444
        %v2446 = vsel %vm438, %v2430, %v2445
        %v2447 = vsel %vm440, %v2434, %v2446
        %v2448 = vsel %vm442, %v2438, %v2447
        %v2449 = vsel %vm444, %v2442, %v2448
        %2451 = vxpose.xlu0.b32.start [1/16] %v2449, 128
        %2452 = vxpose.xlu0.b32.cont [2/16] 0.0, 128
        %2453 = vxpose.xlu0.b32.cont [3/16] 0.0, 128
        %2454 = vxpose.xlu0.b32.cont [4/16] 0.0, 128
        %2455 = vxpose.xlu0.b32.cont [5/16] 0.0, 128
        %2456 = vxpose.xlu0.b32.cont [6/16] 0.0, 128
        %2457 = vxpose.xlu0.b32.cont [7/16] 0.0, 128
        %2458 = vxpose.xlu0.b32.cont [8/16] 0.0, 128
        %2459 = vxpose.xlu0.b32.cont [9/16] 0.0, 128
        %2460 = vxpose.xlu0.b32.cont [10/16] 0.0, 128
        %2461 = vxpose.xlu0.b32.cont [11/16] 0.0, 128
        %2462 = vxpose.xlu0.b32.cont [12/16] 0.0, 128
        %2463 = vxpose.xlu0.b32.cont [13/16] 0.0, 128
        %2464 = vxpose.xlu0.b32.cont [14/16] 0.0, 128
        %2465 = vxpose.xlu0.b32.cont [15/16] 0.0, 128
        %2466 = vxpose.xlu0.b32.end [16/16] 0.0, 128
        %v2467 = vpop.trf.xlu0
        %v2468 = vpop.trf.xlu0
        %v2469 = vpop.trf.xlu0
        %v2470 = vpop.trf.xlu0
        %v2471 = vpop.trf.xlu0
        %v2472 = vpop.trf.xlu0
        %v2473 = vpop.trf.xlu0
        %v2474 = vpop.trf.xlu0
        %v2475 = vpop.trf.xlu0
        %v2476 = vpop.trf.xlu0
        %v2477 = vpop.trf.xlu0
        %v2478 = vpop.trf.xlu0
        %v2479 = vpop.trf.xlu0
        %v2480 = vpop.trf.xlu0
        %v2481 = vpop.trf.xlu0
        %v2482 = vpop.trf.xlu0
        %vm2483 = vcmask 64512
        %2484 = vst.msk [vmem:[%s271] sm:$0xff] %vm2483, %v2467
        %v2493 = vlaneseq
        %v2494 = vshrl.u32 %v2493, 7
        %v2495 = vsub.s32 0, %v2494
        %v2496 = vrot.slane %v811, %v2495
        %v2497 = vlaneseq
        %v2498 = vshrl.u32 %v2497, 7
        %v2499 = vsub.s32 0, %v2498
        %v2500 = vrot.slane %v812, %v2499
        %v2501 = vlaneseq
        %v2502 = vshrl.u32 %v2501, 7
        %v2503 = vsub.s32 0, %v2502
        %v2504 = vrot.slane %v813, %v2503
        %v2505 = vlaneseq
        %v2506 = vshrl.u32 %v2505, 7
        %v2507 = vsub.s32 0, %v2506
        %v2508 = vrot.slane %v814, %v2507
        %v2509 = vlaneseq
        %v2510 = vshrl.u32 %v2509, 7
        %v2511 = vsub.s32 0, %v2510
        %v2512 = vrot.slane %v815, %v2511
        %v2513 = vlaneseq
        %v2514 = vshrl.u32 %v2513, 7
        %v2515 = vsub.s32 0, %v2514
        %v2516 = vrot.slane %v816, %v2515
        %v2517 = vlaneseq
        %v2518 = vshrl.u32 %v2517, 7
        %v2519 = vsub.s32 0, %v2518
        %v2520 = vrot.slane %v817, %v2519
        %v2521 = vlaneseq
        %v2522 = vshrl.u32 %v2521, 7
        %v2523 = vsub.s32 0, %v2522
        %v2524 = vrot.slane %v818, %v2523
        %v2525 = vsel %vm432, %v2500, %v2496
        %v2526 = vsel %vm434, %v2504, %v2525
        %v2527 = vsel %vm436, %v2508, %v2526
        %v2528 = vsel %vm438, %v2512, %v2527
        %v2529 = vsel %vm440, %v2516, %v2528
        %v2530 = vsel %vm442, %v2520, %v2529
        %v2531 = vsel %vm444, %v2524, %v2530
        %2533 = vxpose.xlu0.b32.start [1/16] %v2531, 128
        %2534 = vxpose.xlu0.b32.cont [2/16] 0.0, 128
        %2535 = vxpose.xlu0.b32.cont [3/16] 0.0, 128
        %2536 = vxpose.xlu0.b32.cont [4/16] 0.0, 128
        %2537 = vxpose.xlu0.b32.cont [5/16] 0.0, 128
        %2538 = vxpose.xlu0.b32.cont [6/16] 0.0, 128
        %2539 = vxpose.xlu0.b32.cont [7/16] 0.0, 128
        %2540 = vxpose.xlu0.b32.cont [8/16] 0.0, 128
        %2541 = vxpose.xlu0.b32.cont [9/16] 0.0, 128
        %2542 = vxpose.xlu0.b32.cont [10/16] 0.0, 128
        %2543 = vxpose.xlu0.b32.cont [11/16] 0.0, 128
        %2544 = vxpose.xlu0.b32.cont [12/16] 0.0, 128
        %2545 = vxpose.xlu0.b32.cont [13/16] 0.0, 128
        %2546 = vxpose.xlu0.b32.cont [14/16] 0.0, 128
        %2547 = vxpose.xlu0.b32.cont [15/16] 0.0, 128
        %2548 = vxpose.xlu0.b32.end [16/16] 0.0, 128
        %v2549 = vpop.trf.xlu0
        %v2550 = vpop.trf.xlu0
        %v2551 = vpop.trf.xlu0
        %v2552 = vpop.trf.xlu0
        %v2553 = vpop.trf.xlu0
        %v2554 = vpop.trf.xlu0
        %v2555 = vpop.trf.xlu0
        %v2556 = vpop.trf.xlu0
        %v2557 = vpop.trf.xlu0
        %v2558 = vpop.trf.xlu0
        %v2559 = vpop.trf.xlu0
        %v2560 = vpop.trf.xlu0
        %v2561 = vpop.trf.xlu0
        %v2562 = vpop.trf.xlu0
        %v2563 = vpop.trf.xlu0
        %v2564 = vpop.trf.xlu0
        %s2565 = scalar_lea.vmem %s271, 8 [#allocation11]
        %2566 = vst.msk [vmem:[%s2565] sm:$0xff] %vm2483, %v2549
        %v2575 = vlaneseq
        %v2576 = vshrl.u32 %v2575, 7
        %v2577 = vsub.s32 0, %v2576
        %v2578 = vrot.slane %v1075, %v2577
        %v2579 = vlaneseq
        %v2580 = vshrl.u32 %v2579, 7
        %v2581 = vsub.s32 0, %v2580
        %v2582 = vrot.slane %v1076, %v2581
        %v2583 = vlaneseq
        %v2584 = vshrl.u32 %v2583, 7
        %v2585 = vsub.s32 0, %v2584
        %v2586 = vrot.slane %v1077, %v2585
        %v2587 = vlaneseq
        %v2588 = vshrl.u32 %v2587, 7
        %v2589 = vsub.s32 0, %v2588
        %v2590 = vrot.slane %v1078, %v2589
        %v2591 = vlaneseq
        %v2592 = vshrl.u32 %v2591, 7
        %v2593 = vsub.s32 0, %v2592
        %v2594 = vrot.slane %v1079, %v2593
        %v2595 = vlaneseq
        %v2596 = vshrl.u32 %v2595, 7
        %v2597 = vsub.s32 0, %v2596
        %v2598 = vrot.slane %v1080, %v2597
        %v2599 = vlaneseq
        %v2600 = vshrl.u32 %v2599, 7
        %v2601 = vsub.s32 0, %v2600
        %v2602 = vrot.slane %v1081, %v2601
        %v2603 = vlaneseq
        %v2604 = vshrl.u32 %v2603, 7
        %v2605 = vsub.s32 0, %v2604
        %v2606 = vrot.slane %v1082, %v2605
        %v2607 = vsel %vm432, %v2582, %v2578
        %v2608 = vsel %vm434, %v2586, %v2607
        %v2609 = vsel %vm436, %v2590, %v2608
        %v2610 = vsel %vm438, %v2594, %v2609
        %v2611 = vsel %vm440, %v2598, %v2610
        %v2612 = vsel %vm442, %v2602, %v2611
        %v2613 = vsel %vm444, %v2606, %v2612
        %2615 = vxpose.xlu0.b32.start [1/16] %v2613, 128
        %2616 = vxpose.xlu0.b32.cont [2/16] 0.0, 128
        %2617 = vxpose.xlu0.b32.cont [3/16] 0.0, 128
        %2618 = vxpose.xlu0.b32.cont [4/16] 0.0, 128
        %2619 = vxpose.xlu0.b32.cont [5/16] 0.0, 128
        %2620 = vxpose.xlu0.b32.cont [6/16] 0.0, 128
        %2621 = vxpose.xlu0.b32.cont [7/16] 0.0, 128
        %2622 = vxpose.xlu0.b32.cont [8/16] 0.0, 128
        %2623 = vxpose.xlu0.b32.cont [9/16] 0.0, 128
        %2624 = vxpose.xlu0.b32.cont [10/16] 0.0, 128
        %2625 = vxpose.xlu0.b32.cont [11/16] 0.0, 128
        %2626 = vxpose.xlu0.b32.cont [12/16] 0.0, 128
        %2627 = vxpose.xlu0.b32.cont [13/16] 0.0, 128
        %2628 = vxpose.xlu0.b32.cont [14/16] 0.0, 128
        %2629 = vxpose.xlu0.b32.cont [15/16] 0.0, 128
        %2630 = vxpose.xlu0.b32.end [16/16] 0.0, 128
        %v2631 = vpop.trf.xlu0
        %v2632 = vpop.trf.xlu0
        %v2633 = vpop.trf.xlu0
        %v2634 = vpop.trf.xlu0
        %v2635 = vpop.trf.xlu0
        %v2636 = vpop.trf.xlu0
        %v2637 = vpop.trf.xlu0
        %v2638 = vpop.trf.xlu0
        %v2639 = vpop.trf.xlu0
        %v2640 = vpop.trf.xlu0
        %v2641 = vpop.trf.xlu0
        %v2642 = vpop.trf.xlu0
        %v2643 = vpop.trf.xlu0
        %v2644 = vpop.trf.xlu0
        %v2645 = vpop.trf.xlu0
        %v2646 = vpop.trf.xlu0
        %s2647 = scalar_lea.vmem %s271, 16 [#allocation11]
        %2648 = vst.msk [vmem:[%s2647] sm:$0xff] %vm2483, %v2631
        %v2657 = vlaneseq
        %v2658 = vshrl.u32 %v2657, 7
        %v2659 = vsub.s32 0, %v2658
        %v2660 = vrot.slane %v1339, %v2659
        %v2661 = vlaneseq
        %v2662 = vshrl.u32 %v2661, 7
        %v2663 = vsub.s32 0, %v2662
        %v2664 = vrot.slane %v1340, %v2663
        %v2665 = vlaneseq
        %v2666 = vshrl.u32 %v2665, 7
        %v2667 = vsub.s32 0, %v2666
        %v2668 = vrot.slane %v1341, %v2667
        %v2669 = vlaneseq
        %v2670 = vshrl.u32 %v2669, 7
        %v2671 = vsub.s32 0, %v2670
        %v2672 = vrot.slane %v1342, %v2671
        %v2673 = vlaneseq
        %v2674 = vshrl.u32 %v2673, 7
        %v2675 = vsub.s32 0, %v2674
        %v2676 = vrot.slane %v1343, %v2675
        %v2677 = vlaneseq
        %v2678 = vshrl.u32 %v2677, 7
        %v2679 = vsub.s32 0, %v2678
        %v2680 = vrot.slane %v1344, %v2679
        %v2681 = vlaneseq
        %v2682 = vshrl.u32 %v2681, 7
        %v2683 = vsub.s32 0, %v2682
        %v2684 = vrot.slane %v1345, %v2683
        %v2685 = vlaneseq
        %v2686 = vshrl.u32 %v2685, 7
        %v2687 = vsub.s32 0, %v2686
        %v2688 = vrot.slane %v1346, %v2687
        %v2689 = vsel %vm432, %v2664, %v2660
        %v2690 = vsel %vm434, %v2668, %v2689
        %v2691 = vsel %vm436, %v2672, %v2690
        %v2692 = vsel %vm438, %v2676, %v2691
        %v2693 = vsel %vm440, %v2680, %v2692
        %v2694 = vsel %vm442, %v2684, %v2693
        %v2695 = vsel %vm444, %v2688, %v2694
        %2697 = vxpose.xlu0.b32.start [1/16] %v2695, 128
        %2698 = vxpose.xlu0.b32.cont [2/16] 0.0, 128
        %2699 = vxpose.xlu0.b32.cont [3/16] 0.0, 128
        %2700 = vxpose.xlu0.b32.cont [4/16] 0.0, 128
        %2701 = vxpose.xlu0.b32.cont [5/16] 0.0, 128
        %2702 = vxpose.xlu0.b32.cont [6/16] 0.0, 128
        %2703 = vxpose.xlu0.b32.cont [7/16] 0.0, 128
        %2704 = vxpose.xlu0.b32.cont [8/16] 0.0, 128
        %2705 = vxpose.xlu0.b32.cont [9/16] 0.0, 128
        %2706 = vxpose.xlu0.b32.cont [10/16] 0.0, 128
        %2707 = vxpose.xlu0.b32.cont [11/16] 0.0, 128
        %2708 = vxpose.xlu0.b32.cont [12/16] 0.0, 128
        %2709 = vxpose.xlu0.b32.cont [13/16] 0.0, 128
        %2710 = vxpose.xlu0.b32.cont [14/16] 0.0, 128
        %2711 = vxpose.xlu0.b32.cont [15/16] 0.0, 128
        %2712 = vxpose.xlu0.b32.end [16/16] 0.0, 128
        %v2713 = vpop.trf.xlu0
        %v2714 = vpop.trf.xlu0
        %v2715 = vpop.trf.xlu0
        %v2716 = vpop.trf.xlu0
        %v2717 = vpop.trf.xlu0
        %v2718 = vpop.trf.xlu0
        %v2719 = vpop.trf.xlu0
        %v2720 = vpop.trf.xlu0
        %v2721 = vpop.trf.xlu0
        %v2722 = vpop.trf.xlu0
        %v2723 = vpop.trf.xlu0
        %v2724 = vpop.trf.xlu0
        %v2725 = vpop.trf.xlu0
        %v2726 = vpop.trf.xlu0
        %v2727 = vpop.trf.xlu0
        %v2728 = vpop.trf.xlu0
        %s2729 = scalar_lea.vmem %s271, 24 [#allocation11]
        %2730 = vst.msk [vmem:[%s2729] sm:$0xff] %vm2483, %v2713
        %v2739 = vlaneseq
        %v2740 = vshrl.u32 %v2739, 7
        %v2741 = vsub.s32 0, %v2740
        %v2742 = vrot.slane %v1603, %v2741
        %v2743 = vlaneseq
        %v2744 = vshrl.u32 %v2743, 7
        %v2745 = vsub.s32 0, %v2744
        %v2746 = vrot.slane %v1604, %v2745
        %v2747 = vlaneseq
        %v2748 = vshrl.u32 %v2747, 7
        %v2749 = vsub.s32 0, %v2748
        %v2750 = vrot.slane %v1605, %v2749
        %v2751 = vlaneseq
        %v2752 = vshrl.u32 %v2751, 7
        %v2753 = vsub.s32 0, %v2752
        %v2754 = vrot.slane %v1606, %v2753
        %v2755 = vlaneseq
        %v2756 = vshrl.u32 %v2755, 7
        %v2757 = vsub.s32 0, %v2756
        %v2758 = vrot.slane %v1607, %v2757
        %v2759 = vlaneseq
        %v2760 = vshrl.u32 %v2759, 7
        %v2761 = vsub.s32 0, %v2760
        %v2762 = vrot.slane %v1608, %v2761
        %v2763 = vlaneseq
        %v2764 = vshrl.u32 %v2763, 7
        %v2765 = vsub.s32 0, %v2764
        %v2766 = vrot.slane %v1609, %v2765
        %v2767 = vlaneseq
        %v2768 = vshrl.u32 %v2767, 7
        %v2769 = vsub.s32 0, %v2768
        %v2770 = vrot.slane %v1610, %v2769
        %v2771 = vsel %vm432, %v2746, %v2742
        %v2772 = vsel %vm434, %v2750, %v2771
        %v2773 = vsel %vm436, %v2754, %v2772
        %v2774 = vsel %vm438, %v2758, %v2773
        %v2775 = vsel %vm440, %v2762, %v2774
        %v2776 = vsel %vm442, %v2766, %v2775
        %v2777 = vsel %vm444, %v2770, %v2776
        %2779 = vxpose.xlu0.b32.start [1/16] %v2777, 128
        %2780 = vxpose.xlu0.b32.cont [2/16] 0.0, 128
        %2781 = vxpose.xlu0.b32.cont [3/16] 0.0, 128
        %2782 = vxpose.xlu0.b32.cont [4/16] 0.0, 128
        %2783 = vxpose.xlu0.b32.cont [5/16] 0.0, 128
        %2784 = vxpose.xlu0.b32.cont [6/16] 0.0, 128
        %2785 = vxpose.xlu0.b32.cont [7/16] 0.0, 128
        %2786 = vxpose.xlu0.b32.cont [8/16] 0.0, 128
        %2787 = vxpose.xlu0.b32.cont [9/16] 0.0, 128
        %2788 = vxpose.xlu0.b32.cont [10/16] 0.0, 128
        %2789 = vxpose.xlu0.b32.cont [11/16] 0.0, 128
        %2790 = vxpose.xlu0.b32.cont [12/16] 0.0, 128
        %2791 = vxpose.xlu0.b32.cont [13/16] 0.0, 128
        %2792 = vxpose.xlu0.b32.cont [14/16] 0.0, 128
        %2793 = vxpose.xlu0.b32.cont [15/16] 0.0, 128
        %2794 = vxpose.xlu0.b32.end [16/16] 0.0, 128
        %v2795 = vpop.trf.xlu0
        %v2796 = vpop.trf.xlu0
        %v2797 = vpop.trf.xlu0
        %v2798 = vpop.trf.xlu0
        %v2799 = vpop.trf.xlu0
        %v2800 = vpop.trf.xlu0
        %v2801 = vpop.trf.xlu0
        %v2802 = vpop.trf.xlu0
        %v2803 = vpop.trf.xlu0
        %v2804 = vpop.trf.xlu0
        %v2805 = vpop.trf.xlu0
        %v2806 = vpop.trf.xlu0
        %v2807 = vpop.trf.xlu0
        %v2808 = vpop.trf.xlu0
        %v2809 = vpop.trf.xlu0
        %v2810 = vpop.trf.xlu0
        %s2811 = scalar_lea.vmem %s271, 32 [#allocation11]
        %2812 = vst.msk [vmem:[%s2811] sm:$0xff] %vm2483, %v2795
        %v2821 = vlaneseq
        %v2822 = vshrl.u32 %v2821, 7
        %v2823 = vsub.s32 0, %v2822
        %v2824 = vrot.slane %v1867, %v2823
        %v2825 = vlaneseq
        %v2826 = vshrl.u32 %v2825, 7
        %v2827 = vsub.s32 0, %v2826
        %v2828 = vrot.slane %v1868, %v2827
        %v2829 = vlaneseq
        %v2830 = vshrl.u32 %v2829, 7
        %v2831 = vsub.s32 0, %v2830
        %v2832 = vrot.slane %v1869, %v2831
        %v2833 = vlaneseq
        %v2834 = vshrl.u32 %v2833, 7
        %v2835 = vsub.s32 0, %v2834
        %v2836 = vrot.slane %v1870, %v2835
        %v2837 = vlaneseq
        %v2838 = vshrl.u32 %v2837, 7
        %v2839 = vsub.s32 0, %v2838
        %v2840 = vrot.slane %v1871, %v2839
        %v2841 = vlaneseq
        %v2842 = vshrl.u32 %v2841, 7
        %v2843 = vsub.s32 0, %v2842
        %v2844 = vrot.slane %v1872, %v2843
        %v2845 = vlaneseq
        %v2846 = vshrl.u32 %v2845, 7
        %v2847 = vsub.s32 0, %v2846
        %v2848 = vrot.slane %v1873, %v2847
        %v2849 = vlaneseq
        %v2850 = vshrl.u32 %v2849, 7
        %v2851 = vsub.s32 0, %v2850
        %v2852 = vrot.slane %v1874, %v2851
        %v2853 = vsel %vm432, %v2828, %v2824
        %v2854 = vsel %vm434, %v2832, %v2853
        %v2855 = vsel %vm436, %v2836, %v2854
        %v2856 = vsel %vm438, %v2840, %v2855
        %v2857 = vsel %vm440, %v2844, %v2856
        %v2858 = vsel %vm442, %v2848, %v2857
        %v2859 = vsel %vm444, %v2852, %v2858
        %2861 = vxpose.xlu0.b32.start [1/16] %v2859, 128
        %2862 = vxpose.xlu0.b32.cont [2/16] 0.0, 128
        %2863 = vxpose.xlu0.b32.cont [3/16] 0.0, 128
        %2864 = vxpose.xlu0.b32.cont [4/16] 0.0, 128
        %2865 = vxpose.xlu0.b32.cont [5/16] 0.0, 128
        %2866 = vxpose.xlu0.b32.cont [6/16] 0.0, 128
        %2867 = vxpose.xlu0.b32.cont [7/16] 0.0, 128
        %2868 = vxpose.xlu0.b32.cont [8/16] 0.0, 128
        %2869 = vxpose.xlu0.b32.cont [9/16] 0.0, 128
        %2870 = vxpose.xlu0.b32.cont [10/16] 0.0, 128
        %2871 = vxpose.xlu0.b32.cont [11/16] 0.0, 128
        %2872 = vxpose.xlu0.b32.cont [12/16] 0.0, 128
        %2873 = vxpose.xlu0.b32.cont [13/16] 0.0, 128
        %2874 = vxpose.xlu0.b32.cont [14/16] 0.0, 128
        %2875 = vxpose.xlu0.b32.cont [15/16] 0.0, 128
        %2876 = vxpose.xlu0.b32.end [16/16] 0.0, 128
        %v2877 = vpop.trf.xlu0
        %v2878 = vpop.trf.xlu0
        %v2879 = vpop.trf.xlu0
        %v2880 = vpop.trf.xlu0
        %v2881 = vpop.trf.xlu0
        %v2882 = vpop.trf.xlu0
        %v2883 = vpop.trf.xlu0
        %v2884 = vpop.trf.xlu0
        %v2885 = vpop.trf.xlu0
        %v2886 = vpop.trf.xlu0
        %v2887 = vpop.trf.xlu0
        %v2888 = vpop.trf.xlu0
        %v2889 = vpop.trf.xlu0
        %v2890 = vpop.trf.xlu0
        %v2891 = vpop.trf.xlu0
        %v2892 = vpop.trf.xlu0
        %s2893 = scalar_lea.vmem %s271, 40 [#allocation11]
        %2894 = vst.msk [vmem:[%s2893] sm:$0xff] %vm2483, %v2877
        %v2903 = vlaneseq
        %v2904 = vshrl.u32 %v2903, 7
        %v2905 = vsub.s32 0, %v2904
        %v2906 = vrot.slane %v2131, %v2905
        %v2907 = vlaneseq
        %v2908 = vshrl.u32 %v2907, 7
        %v2909 = vsub.s32 0, %v2908
        %v2910 = vrot.slane %v2132, %v2909
        %v2911 = vlaneseq
        %v2912 = vshrl.u32 %v2911, 7
        %v2913 = vsub.s32 0, %v2912
        %v2914 = vrot.slane %v2133, %v2913
        %v2915 = vlaneseq
        %v2916 = vshrl.u32 %v2915, 7
        %v2917 = vsub.s32 0, %v2916
        %v2918 = vrot.slane %v2134, %v2917
        %v2919 = vlaneseq
        %v2920 = vshrl.u32 %v2919, 7
        %v2921 = vsub.s32 0, %v2920
        %v2922 = vrot.slane %v2135, %v2921
        %v2923 = vlaneseq
        %v2924 = vshrl.u32 %v2923, 7
        %v2925 = vsub.s32 0, %v2924
        %v2926 = vrot.slane %v2136, %v2925
        %v2927 = vlaneseq
        %v2928 = vshrl.u32 %v2927, 7
        %v2929 = vsub.s32 0, %v2928
        %v2930 = vrot.slane %v2137, %v2929
        %v2931 = vlaneseq
        %v2932 = vshrl.u32 %v2931, 7
        %v2933 = vsub.s32 0, %v2932
        %v2934 = vrot.slane %v2138, %v2933
        %v2935 = vsel %vm432, %v2910, %v2906
        %v2936 = vsel %vm434, %v2914, %v2935
        %v2937 = vsel %vm436, %v2918, %v2936
        %v2938 = vsel %vm438, %v2922, %v2937
        %v2939 = vsel %vm440, %v2926, %v2938
        %v2940 = vsel %vm442, %v2930, %v2939
        %v2941 = vsel %vm444, %v2934, %v2940
        %2943 = vxpose.xlu0.b32.start [1/16] %v2941, 128
        %2944 = vxpose.xlu0.b32.cont [2/16] 0.0, 128
        %2945 = vxpose.xlu0.b32.cont [3/16] 0.0, 128
        %2946 = vxpose.xlu0.b32.cont [4/16] 0.0, 128
        %2947 = vxpose.xlu0.b32.cont [5/16] 0.0, 128
        %2948 = vxpose.xlu0.b32.cont [6/16] 0.0, 128
        %2949 = vxpose.xlu0.b32.cont [7/16] 0.0, 128
        %2950 = vxpose.xlu0.b32.cont [8/16] 0.0, 128
        %2951 = vxpose.xlu0.b32.cont [9/16] 0.0, 128
        %2952 = vxpose.xlu0.b32.cont [10/16] 0.0, 128
        %2953 = vxpose.xlu0.b32.cont [11/16] 0.0, 128
        %2954 = vxpose.xlu0.b32.cont [12/16] 0.0, 128
        %2955 = vxpose.xlu0.b32.cont [13/16] 0.0, 128
        %2956 = vxpose.xlu0.b32.cont [14/16] 0.0, 128
        %2957 = vxpose.xlu0.b32.cont [15/16] 0.0, 128
        %2958 = vxpose.xlu0.b32.end [16/16] 0.0, 128
        %v2959 = vpop.trf.xlu0
        %v2960 = vpop.trf.xlu0
        %v2961 = vpop.trf.xlu0
        %v2962 = vpop.trf.xlu0
        %v2963 = vpop.trf.xlu0
        %v2964 = vpop.trf.xlu0
        %v2965 = vpop.trf.xlu0
        %v2966 = vpop.trf.xlu0
        %v2967 = vpop.trf.xlu0
        %v2968 = vpop.trf.xlu0
        %v2969 = vpop.trf.xlu0
        %v2970 = vpop.trf.xlu0
        %v2971 = vpop.trf.xlu0
        %v2972 = vpop.trf.xlu0
        %v2973 = vpop.trf.xlu0
        %v2974 = vpop.trf.xlu0
        %s2975 = scalar_lea.vmem %s271, 48 [#allocation11]
        %2976 = vst.msk [vmem:[%s2975] sm:$0xff] %vm2483, %v2959
        %v2985 = vlaneseq
        %v2986 = vshrl.u32 %v2985, 7
        %v2987 = vsub.s32 0, %v2986
        %v2988 = vrot.slane %v2395, %v2987
        %v2989 = vlaneseq
        %v2990 = vshrl.u32 %v2989, 7
        %v2991 = vsub.s32 0, %v2990
        %v2992 = vrot.slane %v2396, %v2991
        %v2993 = vlaneseq
        %v2994 = vshrl.u32 %v2993, 7
        %v2995 = vsub.s32 0, %v2994
        %v2996 = vrot.slane %v2397, %v2995
        %v2997 = vlaneseq
        %v2998 = vshrl.u32 %v2997, 7
        %v2999 = vsub.s32 0, %v2998
        %v3000 = vrot.slane %v2398, %v2999
        %v3001 = vlaneseq
        %v3002 = vshrl.u32 %v3001, 7
        %v3003 = vsub.s32 0, %v3002
        %v3004 = vrot.slane %v2399, %v3003
        %v3005 = vlaneseq
        %v3006 = vshrl.u32 %v3005, 7
        %v3007 = vsub.s32 0, %v3006
        %v3008 = vrot.slane %v2400, %v3007
        %v3009 = vlaneseq
        %v3010 = vshrl.u32 %v3009, 7
        %v3011 = vsub.s32 0, %v3010
        %v3012 = vrot.slane %v2401, %v3011
        %v3013 = vlaneseq
        %v3014 = vshrl.u32 %v3013, 7
        %v3015 = vsub.s32 0, %v3014
        %v3016 = vrot.slane %v2402, %v3015
        %v3017 = vsel %vm432, %v2992, %v2988
        %v3018 = vsel %vm434, %v2996, %v3017
        %v3019 = vsel %vm436, %v3000, %v3018
        %v3020 = vsel %vm438, %v3004, %v3019
        %v3021 = vsel %vm440, %v3008, %v3020
        %v3022 = vsel %vm442, %v3012, %v3021
        %v3023 = vsel %vm444, %v3016, %v3022
        %3025 = vxpose.xlu0.b32.start [1/16] %v3023, 128
        %3026 = vxpose.xlu0.b32.cont [2/16] 0.0, 128
        %3027 = vxpose.xlu0.b32.cont [3/16] 0.0, 128
        %3028 = vxpose.xlu0.b32.cont [4/16] 0.0, 128
        %3029 = vxpose.xlu0.b32.cont [5/16] 0.0, 128
        %3030 = vxpose.xlu0.b32.cont [6/16] 0.0, 128
        %3031 = vxpose.xlu0.b32.cont [7/16] 0.0, 128
        %3032 = vxpose.xlu0.b32.cont [8/16] 0.0, 128
        %3033 = vxpose.xlu0.b32.cont [9/16] 0.0, 128
        %3034 = vxpose.xlu0.b32.cont [10/16] 0.0, 128
        %3035 = vxpose.xlu0.b32.cont [11/16] 0.0, 128
        %3036 = vxpose.xlu0.b32.cont [12/16] 0.0, 128
        %3037 = vxpose.xlu0.b32.cont [13/16] 0.0, 128
        %3038 = vxpose.xlu0.b32.cont [14/16] 0.0, 128
        %3039 = vxpose.xlu0.b32.cont [15/16] 0.0, 128
        %3040 = vxpose.xlu0.b32.end [16/16] 0.0, 128
        %v3041 = vpop.trf.xlu0
        %v3042 = vpop.trf.xlu0
        %v3043 = vpop.trf.xlu0
        %v3044 = vpop.trf.xlu0
        %v3045 = vpop.trf.xlu0
        %v3046 = vpop.trf.xlu0
        %v3047 = vpop.trf.xlu0
        %v3048 = vpop.trf.xlu0
        %v3049 = vpop.trf.xlu0
        %v3050 = vpop.trf.xlu0
        %v3051 = vpop.trf.xlu0
        %v3052 = vpop.trf.xlu0
        %v3053 = vpop.trf.xlu0
        %v3054 = vpop.trf.xlu0
        %v3055 = vpop.trf.xlu0
        %v3056 = vpop.trf.xlu0
        %s3057 = scalar_lea.vmem %s271, 56 [#allocation11]
        %3058 = vst.msk [vmem:[%s3057] sm:$0xff] %vm2483, %v3041
        %s3059 = sand.u32 %s137, 1
        %s3060 = scalar_lea.sflag [#allocation4], %s3059
        %s3061 = sand.u32 %s137, 1
        %s3062 = smul.addr %s3061, 64
        %s3063 = scalar_lea.vmem [#allocation11], %s3062
        // Predicated region
        $region53: #{tpu_custom_call.1} parent=35 // pred_check
          %p3064 = pneg %p147
        $region54: #{tpu_custom_call.1} parent=35 // pred_check_branch
          %3066 = sbr.rel (%p3064) target = $region56
        $region55: #{tpu_custom_call.1} parent=35 // pred_region
          %s3068 = ssub.s32 1024, 1024
          %3069 = vsyncadd %s3060, %s3068
          %s3070 = smul.addr %s28, 8
          %s3071 = sadd.s32 %s29, %s3070
          %s3072 = smul.addr %s3071, 128
          %s3073 = scalar_lea.hbm %s4, %s3072
          %s3074 = sshll.u32 %s3063, 4
          %s3075 = int_to_ptr.vmem [resolvable:$true] %s3074
          %3080 = dma.vmem_to_hbm [thread:$0]  %s3075, 1024, %s3073, %s3060, 128, 128, 8
        $region56: #{tpu_custom_call.1} parent=35 // pred_fallthru
          _
      $region36: #{tpu_custom_call.1} parent=5 // pred_fallthru
        _
      %p3081 = scmp.le.s32.totalorder 2, %s19
      // Predicated region
      $region57: #{tpu_custom_call.1} parent=5 // pred_check
        %p3082 = pneg %p3081
      $region58: #{tpu_custom_call.1} parent=5 // pred_check_branch
        %3084 = sbr.rel (%p3082) target = $region60
      $region59: #{tpu_custom_call.1} parent=5 // pred_region
        %s3085 = ssub.s32 %s19, 2
        // Predicated region
        $region61: #{tpu_custom_call.1} parent=59 // pred_check
          %p3086 = pneg %p153
        $region62: #{tpu_custom_call.1} parent=59 // pred_check_branch
          %3088 = sbr.rel (%p3086) target = $region64
        $region63: #{tpu_custom_call.1} parent=59 // pred_region
          %s3089 = sand.u32 %s138, 1
          %s3090 = scalar_lea.sflag [#allocation4], %s3089
          %s3091 = sand.u32 %s138, 1
          %s3092 = smul.addr %s3091, 64
          %s3093 = scalar_lea.vmem [#allocation11], %s3092
          %3094 = dma.done %s3090, 1024
        $region64: #{tpu_custom_call.1} parent=59 // pred_fallthru
          _
      $region60: #{tpu_custom_call.1} parent=5 // pred_fallthru
        _
    $region6: #{tpu_custom_call.1} parent=1 // loop_footer
      %s23 = sadd.s32 1, %s19
    $region7: #{tpu_custom_call.1} parent=1 // loop_footer_branch
      %18 = sbr.rel target = $region3
    $region8: #{tpu_custom_call.1} parent=1 // loop_exit
      _
    %3095 = vsyncpa [#allocation3], 1
    %s3096 = scalar_lea.sflag [#allocation3], 1
    %3097 = vsyncpa %s3096, 1
    %3098 = vsyncpa [#allocation4], 1
    %s3099 = scalar_lea.sflag [#allocation4], 1
    %3100 = vsyncpa %s3099, 1
    %3101 = vsyncpa [#allocation5], 1
    %s3102 = scalar_lea.sflag [#allocation5], 1
    %3103 = vsyncpa %s3102, 1
    %3104 = vsyncpa [#allocation6], 1
    %s3105 = scalar_lea.sflag [#allocation6], 1
    %3106 = vsyncpa %s3105, 1
    %3107 = vsyncpa [#allocation10], 1

</llo_original>
